<compile_context>
chip_gen: v7x
topology: tpu7x:2x2x1
jax: 0.10.0
libtpu: 0.0.40
codegen_flags: <defaults>
</compile_context>

<pallas_src>
import functools

import jax
import jax.numpy as jnp
from jax import lax
from jax.experimental import pallas as pl
from jax.experimental.pallas import tpu as pltpu


def _round_up(x, m):
    return (x + m - 1) // m * m


def lstm_fused_kernel(gates_ref, whh_ref, wfc_ref, bfc_ref, out_ref,
                      h_sc, c_sc, h_buf, *, t_blk, h_pad, unroll):
    """One grid step == t_blk LSTM timesteps + fused FC over the block.

    Grid: (batch blocks [parallel], time blocks [sequential/arbitrary]).

    gates_ref: (t_blk, B_blk, 4*H_pad) bf16  precomputed x@W_ih^T + (b_ih+b_hh),
                                             gate order [i, f, o, g]
    whh_ref:   (H_pad, 4*H_pad)        bf16  recurrent weights (gate-major cols)
    wfc_ref:   (H_pad, V_pad)          bf16  FC weights (transposed)
    bfc_ref:   (1, V_pad)              f32   FC bias
    out_ref:   (t_blk, B_blk, V_pad)   f32   logits for this block
    h_sc/c_sc: (B_blk, H_pad)          f32   carried LSTM state
    h_buf:     (t_blk, B_blk, H_pad)   f32   per-block hidden states (scratch)
    """
    @pl.when(pl.program_id(1) == 0)
    def _():
        h_sc[...] = jnp.zeros_like(h_sc)
        c_sc[...] = jnp.zeros_like(c_sc)

    def step(s, carry):
        h, c = carry
        # gates = (x_t @ W_ih^T + b) [precomputed, bf16] + h @ W_hh^T (MXU).
        # W_hh is streamed from VMEM each step (not hoisted) to avoid pinning
        # ~32 vregs across the unrolled loop.
        g = (gates_ref[s].astype(jnp.float32)
             + jnp.dot(h.astype(jnp.bfloat16), whh_ref[...],
                       preferred_element_type=jnp.float32))
        # Gate order [i, f, o, g]: one wide sigmoid + one tanh (2 EUP ops/step).
        sig = jax.nn.sigmoid(g[:, :3 * h_pad])
        i_g = sig[:, 0 * h_pad:1 * h_pad]
        f_g = sig[:, 1 * h_pad:2 * h_pad]
        o_g = sig[:, 2 * h_pad:3 * h_pad]
        g_g = jnp.tanh(g[:, 3 * h_pad:])
        c_new = f_g * c + i_g * g_g
        h_new = o_g * jnp.tanh(c_new)
        h_buf[s] = h_new                      # (B_blk, H_pad) lane-dense store
        return h_new, c_new

    h, c = lax.fori_loop(0, t_blk, step, (h_sc[...], c_sc[...]), unroll=unroll)
    h_sc[...] = h
    c_sc[...] = c

    # Fused FC epilogue: one (t_blk*B_blk, H_pad) @ (H_pad, V_pad) matmul per
    # block; overlaps the next block's gates DMA, no h round-trip through HBM.
    b_blk = h_buf.shape[1]
    hs = h_buf[...].reshape(t_blk * b_blk, h_pad).astype(jnp.bfloat16)
    logits = (jnp.dot(hs, wfc_ref[...], preferred_element_type=jnp.float32)
              + bfc_ref[...])
    out_ref[...] = logits.reshape(t_blk, b_blk, -1)


def init_params(key, vocab_size, hidden_size):
    """Deterministic synthetic parameters matching the PyTorch module's shapes."""
    ks = jax.random.split(key, 7)
    V, H = vocab_size, hidden_size
    bound = 1.0 / jnp.sqrt(H)
    u = lambda k, shape: jax.random.uniform(k, shape, jnp.float32, -bound, bound)
    return {
        "embedding": jax.random.normal(ks[0], (V, V), jnp.float32),  # nn.Embedding(V, V)
        "w_ih": u(ks[1], (4 * H, V)),   # LSTM weight_ih_l0  [i; f; g; o]
        "w_hh": u(ks[2], (4 * H, H)),   # LSTM weight_hh_l0
        "b_ih": u(ks[3], (4 * H,)),
        "b_hh": u(ks[4], (4 * H,)),
        "w_fc": u(ks[5], (V, H)),       # Linear(H, V)
        "b_fc": u(ks[6], (V,)),
    }


def rnn_model_forward(tokens, params, *, t_blk_max=16):
    """tokens: (B, T) int32  ->  logits: (B, T, V) float32 (matches PyTorch module)."""
    V = params["embedding"].shape[0]
    H = params["w_hh"].shape[1]
    B, T = tokens.shape

    H_pad = _round_up(H, 128)            # per-gate lane alignment
    B_pad = _round_up(B, 8)              # sublane alignment
    V_pad = _round_up(V, 128)            # lane-dense logits store
    T_blk = min(T, t_blk_max)            # timesteps per grid step
    T_pad = _round_up(T, T_blk)

    # v7x: batch blocks are independent -> split them over a parallel grid axis
    # (both TensorCores run the recurrence).  Size-1 axis for small batch.
    B_blk = B_pad // 2 if (B_pad >= 32 and B_pad % 32 == 0) else B_pad

    # PyTorch gate order [i, f, g, o] -> [i, f, o, g] so the kernel does one
    # sigmoid over 3 contiguous gate blocks and one tanh.
    perm = jnp.array([0, 1, 3, 2], jnp.int32)

    # ---- one-time precompute (plain-JAX glue, hoisted off the serial path) ----
    # P[v] = embedding[v] @ W_ih^T + (b_ih + b_hh); pad/permute the (V, 4H)
    # table once, then gather straight into (T, B, 4*H_pad) bf16 (no activation
    # transpose / lane-pad pass).
    P = (params["embedding"] @ params["w_ih"].T
         + (params["b_ih"] + params["b_hh"]))                       # (V, 4H) f32
    P = P.reshape(V, 4, H)[:, perm, :]
    P = jnp.pad(P, ((0, 0), (0, 0), (0, H_pad - H)))
    P = P.reshape(V, 4 * H_pad).astype(jnp.bfloat16)
    gates_tm = P[tokens.T]                                          # (T, B, 4*H_pad) bf16
    gates_tm = jnp.pad(gates_tm, ((0, T_pad - T), (0, B_pad - B), (0, 0)))

    # Recurrent weights: gate-major cols, zero-padded so padded lanes stay 0
    # (preact 0 -> i=f=o=0.5, g=0 -> padded h/c lanes remain exactly 0).
    whh_t = params["w_hh"].T.reshape(H, 4, H)[:, perm, :]
    whh_t = jnp.pad(whh_t, ((0, H_pad - H), (0, 0), (0, H_pad - H)))
    whh_t = whh_t.reshape(H_pad, 4 * H_pad).astype(jnp.bfloat16)

    # FC weights: padded h lanes are 0 and padded W rows are 0 -> no pollution.
    wfc_t = jnp.pad(params["w_fc"].T,
                    ((0, H_pad - H), (0, V_pad - V))).astype(jnp.bfloat16)  # (H_pad, V_pad)
    bfc = jnp.pad(params["b_fc"], (0, V_pad - V)).reshape(1, V_pad).astype(jnp.float32)

    # Cap the unroll so the unrolled serial loop doesn't spill vregs at larger
    # B_blk / H_pad (64 vregs total).
    unroll = min(T_blk, 8) if B_blk * H_pad <= 64 * 128 else min(T_blk, 4)

    logits = pl.pallas_call(
        functools.partial(lstm_fused_kernel, t_blk=T_blk, h_pad=H_pad,
                          unroll=unroll),
        out_shape=jax.ShapeDtypeStruct((T_pad, B_pad, V_pad), jnp.float32),
        grid_spec=pltpu.PrefetchScalarGridSpec(
            num_scalar_prefetch=0,
            grid=(B_pad // B_blk, T_pad // T_blk),
            in_specs=[
                pl.BlockSpec((T_blk, B_blk, 4 * H_pad), lambda b, t: (t, b, 0)),  # input gates (bf16)
                pl.BlockSpec((H_pad, 4 * H_pad), lambda b, t: (0, 0)),            # W_hh^T
                pl.BlockSpec((H_pad, V_pad), lambda b, t: (0, 0)),                # W_fc^T
                pl.BlockSpec((1, V_pad), lambda b, t: (0, 0)),                    # b_fc
            ],
            out_specs=pl.BlockSpec((T_blk, B_blk, V_pad), lambda b, t: (t, b, 0)),
            scratch_shapes=[
                pltpu.VMEM((B_blk, H_pad), jnp.float32),            # h state
                pltpu.VMEM((B_blk, H_pad), jnp.float32),            # c state
                pltpu.VMEM((T_blk, B_blk, H_pad), jnp.float32),     # block hidden states
            ],
        ),
        compiler_params=pltpu.CompilerParams(
            dimension_semantics=("parallel", "arbitrary")),  # batch parallel, time sequential
    )(gates_tm, whh_t, wfc_t, bfc)

    logits = logits[:T, :B, :V]                     # strip padding
    return jnp.transpose(logits, (1, 0, 2))         # (B, T, V)


def rnn_model_forward_ref(tokens, params):
    """Pure-JAX reference (mirrors PyTorch LSTM semantics) for validation."""
    H = params["w_hh"].shape[1]
    emb = params["embedding"][tokens]                 # (B, T, V)
    B, T, _ = emb.shape
    w_ih_t, w_hh_t = params["w_ih"].T, params["w_hh"].T
    bias = params["b_ih"] + params["b_hh"]

    def step(carry, x_t):
        h, c = carry
        gates = x_t @ w_ih_t + h @ w_hh_t + bias
        i = jax.nn.sigmoid(gates[:, 0 * H:1 * H])
        f = jax.nn.sigmoid(gates[:, 1 * H:2 * H])
        g = jnp.tanh(gates[:, 2 * H:3 * H])
        o = jax.nn.sigmoid(gates[:, 3 * H:4 * H])
        c = f * c + i * g
        h = o * jnp.tanh(c)
        return (h, c), h

    h0 = jnp.zeros((B, H), jnp.float32)
    (_, _), hs = jax.lax.scan(step, (h0, h0), jnp.transpose(emb, (1, 0, 2)))
    hs = jnp.transpose(hs, (1, 0, 2))                 # (B, T, H)
    return hs @ params["w_fc"].T + params["b_fc"]


if __name__ == "__main__":
    vocab_size = 16   # e.g. len(set(text)) for a small training string
    hidden_size = 32
    batch, seq = 2, 8

    key = jax.random.PRNGKey(0)
    k_params, k_tokens = jax.random.split(key)
    params = init_params(k_params, vocab_size, hidden_size)
    tokens = jax.random.randint(k_tokens, (batch, seq), 0, vocab_size, jnp.int32)

    logits = jax.block_until_ready(rnn_model_forward(tokens, params))
    assert logits.shape == (batch, seq, vocab_size)

    ref = rnn_model_forward_ref(tokens, params)
    # bf16 MXU operands + bf16 precomputed gates -> loosened tolerance vs f32 ref.
    assert jnp.allclose(logits, ref, rtol=5e-2, atol=5e-2), "mismatch vs reference"

    print("KERNEL_OK")
</pallas_src>

<mosaic_0001>
module attributes {stable_mosaic.version = 11 : i64} {
  func.func @lstm_fused_kernel(%arg0: i32, %arg1: i32, %arg2: memref<8x8x512xbf16, #tpu.memory_space<vmem>>, %arg3: memref<128x512xbf16, #tpu.memory_space<vmem>>, %arg4: memref<128x128xbf16, #tpu.memory_space<vmem>>, %arg5: memref<1x128xf32, #tpu.memory_space<vmem>>, %arg6: memref<8x8x128xf32, #tpu.memory_space<vmem>>, %arg7: memref<8x128xf32, #tpu.memory_space<vmem>>, %arg8: memref<8x128xf32, #tpu.memory_space<vmem>>, %arg9: memref<8x8x128xf32, #tpu.memory_space<vmem>>) attributes {dimension_semantics = [#tpu.dimension_semantics<parallel>, #tpu.dimension_semantics<arbitrary>], iteration_bounds = array<i64: 1, 1>, scalar_prefetch = 0 : i64, scratch_operands = 3 : i64, tpu.core_type = #tpu.core_type<tc>, window_params = [{transform_indices = @transform_0, window_bounds = array<i64: 8, 8, 512>}, {pipeline_mode = #tpu.pipeline_mode<synchronous>, transform_indices = @transform_1, window_bounds = array<i64: 128, 512>}, {pipeline_mode = #tpu.pipeline_mode<synchronous>, transform_indices = @transform_2, window_bounds = array<i64: 128, 128>}, {pipeline_mode = #tpu.pipeline_mode<synchronous>, transform_indices = @transform_3, window_bounds = array<i64: 1, 128>}, {transform_indices = @transform_4, window_bounds = array<i64: 8, 8, 128>}]} {
    %c0_i32 = arith.constant 0 : i32
    %0 = arith.cmpi eq, %arg1, %c0_i32 : i32
    %1 = arith.extui %0 : i1 to i32
    %c0_i32_0 = arith.constant 0 : i32
    %2 = arith.cmpi ne, %1, %c0_i32_0 : i32
    scf.if %2 {
      %cst_83 = arith.constant 0.000000e+00 : f32
      %241 = vector.broadcast %cst_83 : f32 to vector<8x128xf32>
      %c0_84 = arith.constant 0 : index
      %c0_85 = arith.constant 0 : index
      %242 = vector.load %arg7[%c0_84, %c0_85] : memref<8x128xf32, #tpu.memory_space<vmem>>, vector<8x128xf32>
      tpu.vector_store %arg7[%c0_84, %c0_85], %241 {strides = array<i32>} : memref<8x128xf32, #tpu.memory_space<vmem>>, vector<8x128xf32>,
      %cst_86 = arith.constant 0.000000e+00 : f32
      %243 = vector.broadcast %cst_86 : f32 to vector<8x128xf32>
      %c0_87 = arith.constant 0 : index
      %c0_88 = arith.constant 0 : index
      %244 = vector.load %arg8[%c0_87, %c0_88] : memref<8x128xf32, #tpu.memory_space<vmem>>, vector<8x128xf32>
      tpu.vector_store %arg8[%c0_87, %c0_88], %243 {strides = array<i32>} : memref<8x128xf32, #tpu.memory_space<vmem>>, vector<8x128xf32>,
    } else {
    }
    %c0 = arith.constant 0 : index
    %c0_1 = arith.constant 0 : index
    %3 = vector.load %arg7[%c0, %c0_1] : memref<8x128xf32, #tpu.memory_space<vmem>>, vector<8x128xf32>
    %c0_2 = arith.constant 0 : index
    %c0_3 = arith.constant 0 : index
    %4 = vector.load %arg8[%c0_2, %c0_3] : memref<8x128xf32, #tpu.memory_space<vmem>>, vector<8x128xf32>
    %c0_i32_4 = arith.constant 0 : i32
    %5 = arith.index_cast %c0_i32_4 : i32 to index
    %c0_5 = arith.constant 0 : index
    %c0_6 = arith.constant 0 : index
    %6 = vector.load %arg2[%5, %c0_5, %c0_6] : memref<8x8x512xbf16, #tpu.memory_space<vmem>>, vector<1x8x512xbf16>
    %7 = vector.shape_cast %6 : vector<1x8x512xbf16> to vector<8x512xbf16>
    %8 = arith.extf %7 : vector<8x512xbf16> to vector<8x512xf32>
    %9 = arith.truncf %3 : vector<8x128xf32> to vector<8x128xbf16>
    %c0_7 = arith.constant 0 : index
    %c0_8 = arith.constant 0 : index
    %10 = vector.load %arg3[%c0_7, %c0_8] : memref<128x512xbf16, #tpu.memory_space<vmem>>, vector<128x512xbf16>
    %cst = arith.constant dense<0.000000e+00> : vector<8x512xf32>
    %11 = tpu.matmul %9, %10, %cst {dimension_numbers = #tpu.dot_dimension_numbers<[1], [0], [0], [1], [0, 0, 1, 1], [], []>} : vector<8x128xbf16>, vector<128x512xbf16>, vector<8x512xf32> -> vector<8x512xf32>
    %12 = arith.addf %8, %11 : vector<8x512xf32>
    %13 = vector.extract_strided_slice %12 {offsets = [0, 0], sizes = [8, 384], strides = [1, 1]} : vector<8x512xf32> to vector<8x384xf32>
    %14 = arith.negf %13 : vector<8x384xf32>
    %15 = math.exp %14 : vector<8x384xf32>
    %cst_9 = arith.constant 1.000000e+00 : f32
    %16 = vector.broadcast %cst_9 : f32 to vector<8x384xf32>
    %17 = arith.addf %16, %15 : vector<8x384xf32>
    %18 = arith.divf %16, %17 : vector<8x384xf32>
    %19 = vector.extract_strided_slice %18 {offsets = [0, 0], sizes = [8, 128], strides = [1, 1]} : vector<8x384xf32> to vector<8x128xf32>
    %20 = vector.extract_strided_slice %18 {offsets = [0, 128], sizes = [8, 128], strides = [1, 1]} : vector<8x384xf32> to vector<8x128xf32>
    %21 = vector.extract_strided_slice %18 {offsets = [0, 256], sizes = [8, 128], strides = [1, 1]} : vector<8x384xf32> to vector<8x128xf32>
    %22 = vector.extract_strided_slice %12 {offsets = [0, 384], sizes = [8, 128], strides = [1, 1]} : vector<8x512xf32> to vector<8x128xf32>
    %23 = math.tanh %22 : vector<8x128xf32>
    %24 = arith.mulf %20, %4 : vector<8x128xf32>
    %25 = arith.mulf %19, %23 : vector<8x128xf32>
    %26 = arith.addf %24, %25 : vector<8x128xf32>
    %27 = math.tanh %26 : vector<8x128xf32>
    %28 = arith.mulf %21, %27 : vector<8x128xf32>
    %29 = arith.index_cast %c0_i32_4 : i32 to index
    %c0_10 = arith.constant 0 : index
    %c0_11 = arith.constant 0 : index
    %30 = vector.load %arg9[%29, %c0_10, %c0_11] : memref<8x8x128xf32, #tpu.memory_space<vmem>>, vector<1x8x128xf32>
    %31 = vector.shape_cast %30 : vector<1x8x128xf32> to vector<8x128xf32>
    %32 = vector.shape_cast %28 : vector<8x128xf32> to vector<1x8x128xf32>
    tpu.vector_store %arg9[%29, %c0_10, %c0_11], %32 {strides = array<i32>} : memref<8x8x128xf32, #tpu.memory_space<vmem>>, vector<1x8x128xf32>,
    %c1_i32 = arith.constant 1 : i32
    %33 = arith.index_cast %c1_i32 : i32 to index
    %c0_12 = arith.constant 0 : index
    %c0_13 = arith.constant 0 : index
    %34 = vector.load %arg2[%33, %c0_12, %c0_13] : memref<8x8x512xbf16, #tpu.memory_space<vmem>>, vector<1x8x512xbf16>
    %35 = vector.shape_cast %34 : vector<1x8x512xbf16> to vector<8x512xbf16>
    %36 = arith.extf %35 : vector<8x512xbf16> to vector<8x512xf32>
    %37 = arith.truncf %28 : vector<8x128xf32> to vector<8x128xbf16>
    %c0_14 = arith.constant 0 : index
    %c0_15 = arith.constant 0 : index
    %38 = vector.load %arg3[%c0_14, %c0_15] : memref<128x512xbf16, #tpu.memory_space<vmem>>, vector<128x512xbf16>
    %cst_16 = arith.constant dense<0.000000e+00> : vector<8x512xf32>
    %39 = tpu.matmul %37, %38, %cst_16 {dimension_numbers = #tpu.dot_dimension_numbers<[1], [0], [0], [1], [0, 0, 1, 1], [], []>} : vector<8x128xbf16>, vector<128x512xbf16>, vector<8x512xf32> -> vector<8x512xf32>
    %40 = arith.addf %36, %39 : vector<8x512xf32>
    %41 = vector.extract_strided_slice %40 {offsets = [0, 0], sizes = [8, 384], strides = [1, 1]} : vector<8x512xf32> to vector<8x384xf32>
    %42 = arith.negf %41 : vector<8x384xf32>
    %43 = math.exp %42 : vector<8x384xf32>
    %cst_17 = arith.constant 1.000000e+00 : f32
    %44 = vector.broadcast %cst_17 : f32 to vector<8x384xf32>
    %45 = arith.addf %44, %43 : vector<8x384xf32>
    %46 = arith.divf %44, %45 : vector<8x384xf32>
    %47 = vector.extract_strided_slice %46 {offsets = [0, 0], sizes = [8, 128], strides = [1, 1]} : vector<8x384xf32> to vector<8x128xf32>
    %48 = vector.extract_strided_slice %46 {offsets = [0, 128], sizes = [8, 128], strides = [1, 1]} : vector<8x384xf32> to vector<8x128xf32>
    %49 = vector.extract_strided_slice %46 {offsets = [0, 256], sizes = [8, 128], strides = [1, 1]} : vector<8x384xf32> to vector<8x128xf32>
    %50 = vector.extract_strided_slice %40 {offsets = [0, 384], sizes = [8, 128], strides = [1, 1]} : vector<8x512xf32> to vector<8x128xf32>
    %51 = math.tanh %50 : vector<8x128xf32>
    %52 = arith.mulf %48, %26 : vector<8x128xf32>
    %53 = arith.mulf %47, %51 : vector<8x128xf32>
    %54 = arith.addf %52, %53 : vector<8x128xf32>
    %55 = math.tanh %54 : vector<8x128xf32>
    %56 = arith.mulf %49, %55 : vector<8x128xf32>
    %57 = arith.index_cast %c1_i32 : i32 to index
    %c0_18 = arith.constant 0 : index
    %c0_19 = arith.constant 0 : index
    %58 = vector.load %arg9[%57, %c0_18, %c0_19] : memref<8x8x128xf32, #tpu.memory_space<vmem>>, vector<1x8x128xf32>
    %59 = vector.shape_cast %58 : vector<1x8x128xf32> to vector<8x128xf32>
    %60 = vector.shape_cast %56 : vector<8x128xf32> to vector<1x8x128xf32>
    tpu.vector_store %arg9[%57, %c0_18, %c0_19], %60 {strides = array<i32>} : memref<8x8x128xf32, #tpu.memory_space<vmem>>, vector<1x8x128xf32>,
    %c2_i32 = arith.constant 2 : i32
    %61 = arith.index_cast %c2_i32 : i32 to index
    %c0_20 = arith.constant 0 : index
    %c0_21 = arith.constant 0 : index
    %62 = vector.load %arg2[%61, %c0_20, %c0_21] : memref<8x8x512xbf16, #tpu.memory_space<vmem>>, vector<1x8x512xbf16>
    %63 = vector.shape_cast %62 : vector<1x8x512xbf16> to vector<8x512xbf16>
    %64 = arith.extf %63 : vector<8x512xbf16> to vector<8x512xf32>
    %65 = arith.truncf %56 : vector<8x128xf32> to vector<8x128xbf16>
    %c0_22 = arith.constant 0 : index
    %c0_23 = arith.constant 0 : index
    %66 = vector.load %arg3[%c0_22, %c0_23] : memref<128x512xbf16, #tpu.memory_space<vmem>>, vector<128x512xbf16>
    %cst_24 = arith.constant dense<0.000000e+00> : vector<8x512xf32>
    %67 = tpu.matmul %65, %66, %cst_24 {dimension_numbers = #tpu.dot_dimension_numbers<[1], [0], [0], [1], [0, 0, 1, 1], [], []>} : vector<8x128xbf16>, vector<128x512xbf16>, vector<8x512xf32> -> vector<8x512xf32>
    %68 = arith.addf %64, %67 : vector<8x512xf32>
    %69 = vector.extract_strided_slice %68 {offsets = [0, 0], sizes = [8, 384], strides = [1, 1]} : vector<8x512xf32> to vector<8x384xf32>
    %70 = arith.negf %69 : vector<8x384xf32>
    %71 = math.exp %70 : vector<8x384xf32>
    %cst_25 = arith.constant 1.000000e+00 : f32
    %72 = vector.broadcast %cst_25 : f32 to vector<8x384xf32>
    %73 = arith.addf %72, %71 : vector<8x384xf32>
    %74 = arith.divf %72, %73 : vector<8x384xf32>
    %75 = vector.extract_strided_slice %74 {offsets = [0, 0], sizes = [8, 128], strides = [1, 1]} : vector<8x384xf32> to vector<8x128xf32>
    %76 = vector.extract_strided_slice %74 {offsets = [0, 128], sizes = [8, 128], strides = [1, 1]} : vector<8x384xf32> to vector<8x128xf32>
    %77 = vector.extract_strided_slice %74 {offsets = [0, 256], sizes = [8, 128], strides = [1, 1]} : vector<8x384xf32> to vector<8x128xf32>
    %78 = vector.extract_strided_slice %68 {offsets = [0, 384], sizes = [8, 128], strides = [1, 1]} : vector<8x512xf32> to vector<8x128xf32>
    %79 = math.tanh %78 : vector<8x128xf32>
    %80 = arith.mulf %76, %54 : vector<8x128xf32>
    %81 = arith.mulf %75, %79 : vector<8x128xf32>
    %82 = arith.addf %80, %81 : vector<8x128xf32>
    %83 = math.tanh %82 : vector<8x128xf32>
    %84 = arith.mulf %77, %83 : vector<8x128xf32>
    %85 = arith.index_cast %c2_i32 : i32 to index
    %c0_26 = arith.constant 0 : index
    %c0_27 = arith.constant 0 : index
    %86 = vector.load %arg9[%85, %c0_26, %c0_27] : memref<8x8x128xf32, #tpu.memory_space<vmem>>, vector<1x8x128xf32>
    %87 = vector.shape_cast %86 : vector<1x8x128xf32> to vector<8x128xf32>
    %88 = vector.shape_cast %84 : vector<8x128xf32> to vector<1x8x128xf32>
    tpu.vector_store %arg9[%85, %c0_26, %c0_27], %88 {strides = array<i32>} : memref<8x8x128xf32, #tpu.memory_space<vmem>>, vector<1x8x128xf32>,
    %c3_i32 = arith.constant 3 : i32
    %89 = arith.index_cast %c3_i32 : i32 to index
    %c0_28 = arith.constant 0 : index
    %c0_29 = arith.constant 0 : index
    %90 = vector.load %arg2[%89, %c0_28, %c0_29] : memref<8x8x512xbf16, #tpu.memory_space<vmem>>, vector<1x8x512xbf16>
    %91 = vector.shape_cast %90 : vector<1x8x512xbf16> to vector<8x512xbf16>
    %92 = arith.extf %91 : vector<8x512xbf16> to vector<8x512xf32>
    %93 = arith.truncf %84 : vector<8x128xf32> to vector<8x128xbf16>
    %c0_30 = arith.constant 0 : index
    %c0_31 = arith.constant 0 : index
    %94 = vector.load %arg3[%c0_30, %c0_31] : memref<128x512xbf16, #tpu.memory_space<vmem>>, vector<128x512xbf16>
    %cst_32 = arith.constant dense<0.000000e+00> : vector<8x512xf32>
    %95 = tpu.matmul %93, %94, %cst_32 {dimension_numbers = #tpu.dot_dimension_numbers<[1], [0], [0], [1], [0, 0, 1, 1], [], []>} : vector<8x128xbf16>, vector<128x512xbf16>, vector<8x512xf32> -> vector<8x512xf32>
    %96 = arith.addf %92, %95 : vector<8x512xf32>
    %97 = vector.extract_strided_slice %96 {offsets = [0, 0], sizes = [8, 384], strides = [1, 1]} : vector<8x512xf32> to vector<8x384xf32>
    %98 = arith.negf %97 : vector<8x384xf32>
    %99 = math.exp %98 : vector<8x384xf32>
    %cst_33 = arith.constant 1.000000e+00 : f32
    %100 = vector.broadcast %cst_33 : f32 to vector<8x384xf32>
    %101 = arith.addf %100, %99 : vector<8x384xf32>
    %102 = arith.divf %100, %101 : vector<8x384xf32>
    %103 = vector.extract_strided_slice %102 {offsets = [0, 0], sizes = [8, 128], strides = [1, 1]} : vector<8x384xf32> to vector<8x128xf32>
    %104 = vector.extract_strided_slice %102 {offsets = [0, 128], sizes = [8, 128], strides = [1, 1]} : vector<8x384xf32> to vector<8x128xf32>
    %105 = vector.extract_strided_slice %102 {offsets = [0, 256], sizes = [8, 128], strides = [1, 1]} : vector<8x384xf32> to vector<8x128xf32>
    %106 = vector.extract_strided_slice %96 {offsets = [0, 384], sizes = [8, 128], strides = [1, 1]} : vector<8x512xf32> to vector<8x128xf32>
    %107 = math.tanh %106 : vector<8x128xf32>
    %108 = arith.mulf %104, %82 : vector<8x128xf32>
    %109 = arith.mulf %103, %107 : vector<8x128xf32>
    %110 = arith.addf %108, %109 : vector<8x128xf32>
    %111 = math.tanh %110 : vector<8x128xf32>
    %112 = arith.mulf %105, %111 : vector<8x128xf32>
    %113 = arith.index_cast %c3_i32 : i32 to index
    %c0_34 = arith.constant 0 : index
    %c0_35 = arith.constant 0 : index
    %114 = vector.load %arg9[%113, %c0_34, %c0_35] : memref<8x8x128xf32, #tpu.memory_space<vmem>>, vector<1x8x128xf32>
    %115 = vector.shape_cast %114 : vector<1x8x128xf32> to vector<8x128xf32>
    %116 = vector.shape_cast %112 : vector<8x128xf32> to vector<1x8x128xf32>
    tpu.vector_store %arg9[%113, %c0_34, %c0_35], %116 {strides = array<i32>} : memref<8x8x128xf32, #tpu.memory_space<vmem>>, vector<1x8x128xf32>,
    %c4_i32 = arith.constant 4 : i32
    %117 = arith.index_cast %c4_i32 : i32 to index
    %c0_36 = arith.constant 0 : index
    %c0_37 = arith.constant 0 : index
    %118 = vector.load %arg2[%117, %c0_36, %c0_37] : memref<8x8x512xbf16, #tpu.memory_space<vmem>>, vector<1x8x512xbf16>
    %119 = vector.shape_cast %118 : vector<1x8x512xbf16> to vector<8x512xbf16>
    %120 = arith.extf %119 : vector<8x512xbf16> to vector<8x512xf32>
    %121 = arith.truncf %112 : vector<8x128xf32> to vector<8x128xbf16>
    %c0_38 = arith.constant 0 : index
    %c0_39 = arith.constant 0 : index
    %122 = vector.load %arg3[%c0_38, %c0_39] : memref<128x512xbf16, #tpu.memory_space<vmem>>, vector<128x512xbf16>
    %cst_40 = arith.constant dense<0.000000e+00> : vector<8x512xf32>
    %123 = tpu.matmul %121, %122, %cst_40 {dimension_numbers = #tpu.dot_dimension_numbers<[1], [0], [0], [1], [0, 0, 1, 1], [], []>} : vector<8x128xbf16>, vector<128x512xbf16>, vector<8x512xf32> -> vector<8x512xf32>
    %124 = arith.addf %120, %123 : vector<8x512xf32>
    %125 = vector.extract_strided_slice %124 {offsets = [0, 0], sizes = [8, 384], strides = [1, 1]} : vector<8x512xf32> to vector<8x384xf32>
    %126 = arith.negf %125 : vector<8x384xf32>
    %127 = math.exp %126 : vector<8x384xf32>
    %cst_41 = arith.constant 1.000000e+00 : f32
    %128 = vector.broadcast %cst_41 : f32 to vector<8x384xf32>
    %129 = arith.addf %128, %127 : vector<8x384xf32>
    %130 = arith.divf %128, %129 : vector<8x384xf32>
    %131 = vector.extract_strided_slice %130 {offsets = [0, 0], sizes = [8, 128], strides = [1, 1]} : vector<8x384xf32> to vector<8x128xf32>
    %132 = vector.extract_strided_slice %130 {offsets = [0, 128], sizes = [8, 128], strides = [1, 1]} : vector<8x384xf32> to vector<8x128xf32>
    %133 = vector.extract_strided_slice %130 {offsets = [0, 256], sizes = [8, 128], strides = [1, 1]} : vector<8x384xf32> to vector<8x128xf32>
    %134 = vector.extract_strided_slice %124 {offsets = [0, 384], sizes = [8, 128], strides = [1, 1]} : vector<8x512xf32> to vector<8x128xf32>
    %135 = math.tanh %134 : vector<8x128xf32>
    %136 = arith.mulf %132, %110 : vector<8x128xf32>
    %137 = arith.mulf %131, %135 : vector<8x128xf32>
    %138 = arith.addf %136, %137 : vector<8x128xf32>
    %139 = math.tanh %138 : vector<8x128xf32>
    %140 = arith.mulf %133, %139 : vector<8x128xf32>
    %141 = arith.index_cast %c4_i32 : i32 to index
    %c0_42 = arith.constant 0 : index
    %c0_43 = arith.constant 0 : index
    %142 = vector.load %arg9[%141, %c0_42, %c0_43] : memref<8x8x128xf32, #tpu.memory_space<vmem>>, vector<1x8x128xf32>
    %143 = vector.shape_cast %142 : vector<1x8x128xf32> to vector<8x128xf32>
    %144 = vector.shape_cast %140 : vector<8x128xf32> to vector<1x8x128xf32>
    tpu.vector_store %arg9[%141, %c0_42, %c0_43], %144 {strides = array<i32>} : memref<8x8x128xf32, #tpu.memory_space<vmem>>, vector<1x8x128xf32>,
    %c5_i32 = arith.constant 5 : i32
    %145 = arith.index_cast %c5_i32 : i32 to index
    %c0_44 = arith.constant 0 : index
    %c0_45 = arith.constant 0 : index
    %146 = vector.load %arg2[%145, %c0_44, %c0_45] : memref<8x8x512xbf16, #tpu.memory_space<vmem>>, vector<1x8x512xbf16>
    %147 = vector.shape_cast %146 : vector<1x8x512xbf16> to vector<8x512xbf16>
    %148 = arith.extf %147 : vector<8x512xbf16> to vector<8x512xf32>
    %149 = arith.truncf %140 : vector<8x128xf32> to vector<8x128xbf16>
    %c0_46 = arith.constant 0 : index
    %c0_47 = arith.constant 0 : index
    %150 = vector.load %arg3[%c0_46, %c0_47] : memref<128x512xbf16, #tpu.memory_space<vmem>>, vector<128x512xbf16>
    %cst_48 = arith.constant dense<0.000000e+00> : vector<8x512xf32>
    %151 = tpu.matmul %149, %150, %cst_48 {dimension_numbers = #tpu.dot_dimension_numbers<[1], [0], [0], [1], [0, 0, 1, 1], [], []>} : vector<8x128xbf16>, vector<128x512xbf16>, vector<8x512xf32> -> vector<8x512xf32>
    %152 = arith.addf %148, %151 : vector<8x512xf32>
    %153 = vector.extract_strided_slice %152 {offsets = [0, 0], sizes = [8, 384], strides = [1, 1]} : vector<8x512xf32> to vector<8x384xf32>
    %154 = arith.negf %153 : vector<8x384xf32>
    %155 = math.exp %154 : vector<8x384xf32>
    %cst_49 = arith.constant 1.000000e+00 : f32
    %156 = vector.broadcast %cst_49 : f32 to vector<8x384xf32>
    %157 = arith.addf %156, %155 : vector<8x384xf32>
    %158 = arith.divf %156, %157 : vector<8x384xf32>
    %159 = vector.extract_strided_slice %158 {offsets = [0, 0], sizes = [8, 128], strides = [1, 1]} : vector<8x384xf32> to vector<8x128xf32>
    %160 = vector.extract_strided_slice %158 {offsets = [0, 128], sizes = [8, 128], strides = [1, 1]} : vector<8x384xf32> to vector<8x128xf32>
    %161 = vector.extract_strided_slice %158 {offsets = [0, 256], sizes = [8, 128], strides = [1, 1]} : vector<8x384xf32> to vector<8x128xf32>
    %162 = vector.extract_strided_slice %152 {offsets = [0, 384], sizes = [8, 128], strides = [1, 1]} : vector<8x512xf32> to vector<8x128xf32>
    %163 = math.tanh %162 : vector<8x128xf32>
    %164 = arith.mulf %160, %138 : vector<8x128xf32>
    %165 = arith.mulf %159, %163 : vector<8x128xf32>
    %166 = arith.addf %164, %165 : vector<8x128xf32>
    %167 = math.tanh %166 : vector<8x128xf32>
    %168 = arith.mulf %161, %167 : vector<8x128xf32>
    %169 = arith.index_cast %c5_i32 : i32 to index
    %c0_50 = arith.constant 0 : index
    %c0_51 = arith.constant 0 : index
    %170 = vector.load %arg9[%169, %c0_50, %c0_51] : memref<8x8x128xf32, #tpu.memory_space<vmem>>, vector<1x8x128xf32>
    %171 = vector.shape_cast %170 : vector<1x8x128xf32> to vector<8x128xf32>
    %172 = vector.shape_cast %168 : vector<8x128xf32> to vector<1x8x128xf32>
    tpu.vector_store %arg9[%169, %c0_50, %c0_51], %172 {strides = array<i32>} : memref<8x8x128xf32, #tpu.memory_space<vmem>>, vector<1x8x128xf32>,
    %c6_i32 = arith.constant 6 : i32
    %173 = arith.index_cast %c6_i32 : i32 to index
    %c0_52 = arith.constant 0 : index
    %c0_53 = arith.constant 0 : index
    %174 = vector.load %arg2[%173, %c0_52, %c0_53] : memref<8x8x512xbf16, #tpu.memory_space<vmem>>, vector<1x8x512xbf16>
    %175 = vector.shape_cast %174 : vector<1x8x512xbf16> to vector<8x512xbf16>
    %176 = arith.extf %175 : vector<8x512xbf16> to vector<8x512xf32>
    %177 = arith.truncf %168 : vector<8x128xf32> to vector<8x128xbf16>
    %c0_54 = arith.constant 0 : index
    %c0_55 = arith.constant 0 : index
    %178 = vector.load %arg3[%c0_54, %c0_55] : memref<128x512xbf16, #tpu.memory_space<vmem>>, vector<128x512xbf16>
    %cst_56 = arith.constant dense<0.000000e+00> : vector<8x512xf32>
    %179 = tpu.matmul %177, %178, %cst_56 {dimension_numbers = #tpu.dot_dimension_numbers<[1], [0], [0], [1], [0, 0, 1, 1], [], []>} : vector<8x128xbf16>, vector<128x512xbf16>, vector<8x512xf32> -> vector<8x512xf32>
    %180 = arith.addf %176, %179 : vector<8x512xf32>
    %181 = vector.extract_strided_slice %180 {offsets = [0, 0], sizes = [8, 384], strides = [1, 1]} : vector<8x512xf32> to vector<8x384xf32>
    %182 = arith.negf %181 : vector<8x384xf32>
    %183 = math.exp %182 : vector<8x384xf32>
    %cst_57 = arith.constant 1.000000e+00 : f32
    %184 = vector.broadcast %cst_57 : f32 to vector<8x384xf32>
    %185 = arith.addf %184, %183 : vector<8x384xf32>
    %186 = arith.divf %184, %185 : vector<8x384xf32>
    %187 = vector.extract_strided_slice %186 {offsets = [0, 0], sizes = [8, 128], strides = [1, 1]} : vector<8x384xf32> to vector<8x128xf32>
    %188 = vector.extract_strided_slice %186 {offsets = [0, 128], sizes = [8, 128], strides = [1, 1]} : vector<8x384xf32> to vector<8x128xf32>
    %189 = vector.extract_strided_slice %186 {offsets = [0, 256], sizes = [8, 128], strides = [1, 1]} : vector<8x384xf32> to vector<8x128xf32>
    %190 = vector.extract_strided_slice %180 {offsets = [0, 384], sizes = [8, 128], strides = [1, 1]} : vector<8x512xf32> to vector<8x128xf32>
    %191 = math.tanh %190 : vector<8x128xf32>
    %192 = arith.mulf %188, %166 : vector<8x128xf32>
    %193 = arith.mulf %187, %191 : vector<8x128xf32>
    %194 = arith.addf %192, %193 : vector<8x128xf32>
    %195 = math.tanh %194 : vector<8x128xf32>
    %196 = arith.mulf %189, %195 : vector<8x128xf32>
    %197 = arith.index_cast %c6_i32 : i32 to index
    %c0_58 = arith.constant 0 : index
    %c0_59 = arith.constant 0 : index
    %198 = vector.load %arg9[%197, %c0_58, %c0_59] : memref<8x8x128xf32, #tpu.memory_space<vmem>>, vector<1x8x128xf32>
    %199 = vector.shape_cast %198 : vector<1x8x128xf32> to vector<8x128xf32>
    %200 = vector.shape_cast %196 : vector<8x128xf32> to vector<1x8x128xf32>
    tpu.vector_store %arg9[%197, %c0_58, %c0_59], %200 {strides = array<i32>} : memref<8x8x128xf32, #tpu.memory_space<vmem>>, vector<1x8x128xf32>,
    %c7_i32 = arith.constant 7 : i32
    %201 = arith.index_cast %c7_i32 : i32 to index
    %c0_60 = arith.constant 0 : index
    %c0_61 = arith.constant 0 : index
    %202 = vector.load %arg2[%201, %c0_60, %c0_61] : memref<8x8x512xbf16, #tpu.memory_space<vmem>>, vector<1x8x512xbf16>
    %203 = vector.shape_cast %202 : vector<1x8x512xbf16> to vector<8x512xbf16>
    %204 = arith.extf %203 : vector<8x512xbf16> to vector<8x512xf32>
    %205 = arith.truncf %196 : vector<8x128xf32> to vector<8x128xbf16>
    %c0_62 = arith.constant 0 : index
    %c0_63 = arith.constant 0 : index
    %206 = vector.load %arg3[%c0_62, %c0_63] : memref<128x512xbf16, #tpu.memory_space<vmem>>, vector<128x512xbf16>
    %cst_64 = arith.constant dense<0.000000e+00> : vector<8x512xf32>
    %207 = tpu.matmul %205, %206, %cst_64 {dimension_numbers = #tpu.dot_dimension_numbers<[1], [0], [0], [1], [0, 0, 1, 1], [], []>} : vector<8x128xbf16>, vector<128x512xbf16>, vector<8x512xf32> -> vector<8x512xf32>
    %208 = arith.addf %204, %207 : vector<8x512xf32>
    %209 = vector.extract_strided_slice %208 {offsets = [0, 0], sizes = [8, 384], strides = [1, 1]} : vector<8x512xf32> to vector<8x384xf32>
    %210 = arith.negf %209 : vector<8x384xf32>
    %211 = math.exp %210 : vector<8x384xf32>
    %cst_65 = arith.constant 1.000000e+00 : f32
    %212 = vector.broadcast %cst_65 : f32 to vector<8x384xf32>
    %213 = arith.addf %212, %211 : vector<8x384xf32>
    %214 = arith.divf %212, %213 : vector<8x384xf32>
    %215 = vector.extract_strided_slice %214 {offsets = [0, 0], sizes = [8, 128], strides = [1, 1]} : vector<8x384xf32> to vector<8x128xf32>
    %216 = vector.extract_strided_slice %214 {offsets = [0, 128], sizes = [8, 128], strides = [1, 1]} : vector<8x384xf32> to vector<8x128xf32>
    %217 = vector.extract_strided_slice %214 {offsets = [0, 256], sizes = [8, 128], strides = [1, 1]} : vector<8x384xf32> to vector<8x128xf32>
    %218 = vector.extract_strided_slice %208 {offsets = [0, 384], sizes = [8, 128], strides = [1, 1]} : vector<8x512xf32> to vector<8x128xf32>
    %219 = math.tanh %218 : vector<8x128xf32>
    %220 = arith.mulf %216, %194 : vector<8x128xf32>
    %221 = arith.mulf %215, %219 : vector<8x128xf32>
    %222 = arith.addf %220, %221 : vector<8x128xf32>
    %223 = math.tanh %222 : vector<8x128xf32>
    %224 = arith.mulf %217, %223 : vector<8x128xf32>
    %225 = arith.index_cast %c7_i32 : i32 to index
    %c0_66 = arith.constant 0 : index
    %c0_67 = arith.constant 0 : index
    %226 = vector.load %arg9[%225, %c0_66, %c0_67] : memref<8x8x128xf32, #tpu.memory_space<vmem>>, vector<1x8x128xf32>
    %227 = vector.shape_cast %226 : vector<1x8x128xf32> to vector<8x128xf32>
    %228 = vector.shape_cast %224 : vector<8x128xf32> to vector<1x8x128xf32>
    tpu.vector_store %arg9[%225, %c0_66, %c0_67], %228 {strides = array<i32>} : memref<8x8x128xf32, #tpu.memory_space<vmem>>, vector<1x8x128xf32>,
    %c8_i32 = arith.constant 8 : i32
    %c0_68 = arith.constant 0 : index
    %c0_69 = arith.constant 0 : index
    %229 = vector.load %arg7[%c0_68, %c0_69] : memref<8x128xf32, #tpu.memory_space<vmem>>, vector<8x128xf32>
    tpu.vector_store %arg7[%c0_68, %c0_69], %224 {strides = array<i32>} : memref<8x128xf32, #tpu.memory_space<vmem>>, vector<8x128xf32>,
    %c0_70 = arith.constant 0 : index
    %c0_71 = arith.constant 0 : index
    %230 = vector.load %arg8[%c0_70, %c0_71] : memref<8x128xf32, #tpu.memory_space<vmem>>, vector<8x128xf32>
    tpu.vector_store %arg8[%c0_70, %c0_71], %222 {strides = array<i32>} : memref<8x128xf32, #tpu.memory_space<vmem>>, vector<8x128xf32>,
    %c0_72 = arith.constant 0 : index
    %c0_73 = arith.constant 0 : index
    %c0_74 = arith.constant 0 : index
    %231 = vector.load %arg9[%c0_72, %c0_73, %c0_74] : memref<8x8x128xf32, #tpu.memory_space<vmem>>, vector<8x8x128xf32>
    %232 = vector.shape_cast %231 : vector<8x8x128xf32> to vector<64x128xf32>
    %233 = arith.truncf %232 : vector<64x128xf32> to vector<64x128xbf16>
    %c0_75 = arith.constant 0 : index
    %c0_76 = arith.constant 0 : index
    %234 = vector.load %arg4[%c0_75, %c0_76] : memref<128x128xbf16, #tpu.memory_space<vmem>>, vector<128x128xbf16>
    %cst_77 = arith.constant dense<0.000000e+00> : vector<64x128xf32>
    %235 = tpu.matmul %233, %234, %cst_77 {dimension_numbers = #tpu.dot_dimension_numbers<[1], [0], [0], [1], [0, 0, 1, 1], [], []>} : vector<64x128xbf16>, vector<128x128xbf16>, vector<64x128xf32> -> vector<64x128xf32>
    %c0_78 = arith.constant 0 : index
    %c0_79 = arith.constant 0 : index
    %236 = vector.load %arg5[%c0_78, %c0_79] : memref<1x128xf32, #tpu.memory_space<vmem>>, vector<1x128xf32>
    %237 = vector.broadcast %236 : vector<1x128xf32> to vector<64x128xf32>
    %238 = arith.addf %235, %237 : vector<64x128xf32>
    %239 = vector.shape_cast %238 : vector<64x128xf32> to vector<8x8x128xf32>
    %c0_80 = arith.constant 0 : index
    %c0_81 = arith.constant 0 : index
    %c0_82 = arith.constant 0 : index
    %240 = vector.load %arg6[%c0_80, %c0_81, %c0_82] : memref<8x8x128xf32, #tpu.memory_space<vmem>>, vector<8x8x128xf32>
    tpu.vector_store %arg6[%c0_80, %c0_81, %c0_82], %239 {strides = array<i32>} : memref<8x8x128xf32, #tpu.memory_space<vmem>>, vector<8x8x128xf32>,
    return
  }
  func.func @transform_0(%arg0: i32, %arg1: i32) -> (i32, i32, i32) {
    %c0_i32 = arith.constant 0 : i32
    %c0_i32_0 = arith.constant 0 : i32
    return %arg1, %arg0, %c0_i32 : i32, i32, i32
  }
  func.func @transform_1(%arg0: i32, %arg1: i32) -> (i32, i32) {
    %c0_i32 = arith.constant 0 : i32
    %c0_i32_0 = arith.constant 0 : i32
    %c0_i32_1 = arith.constant 0 : i32
    return %c0_i32, %c0_i32_0 : i32, i32
  }
  func.func @transform_2(%arg0: i32, %arg1: i32) -> (i32, i32) {
    %c0_i32 = arith.constant 0 : i32
    %c0_i32_0 = arith.constant 0 : i32
    %c0_i32_1 = arith.constant 0 : i32
    return %c0_i32, %c0_i32_0 : i32, i32
  }
  func.func @transform_3(%arg0: i32, %arg1: i32) -> (i32, i32) {
    %c0_i32 = arith.constant 0 : i32
    %c0_i32_0 = arith.constant 0 : i32
    %c0_i32_1 = arith.constant 0 : i32
    return %c0_i32, %c0_i32_0 : i32, i32
  }
  func.func @transform_4(%arg0: i32, %arg1: i32) -> (i32, i32, i32) {
    %c0_i32 = arith.constant 0 : i32
    %c0_i32_0 = arith.constant 0 : i32
    return %arg1, %arg0, %c0_i32 : i32, i32, i32
  }
}

</mosaic_0001>

<llo_original>
// kernel: tpu_custom_call.1
$region0: #{tpu_custom_call.1}
  #allocation0 [shape = 'u32[]', space=smem, size = 0x4, offset = 0x4, fixed_abs, tag = 'smem constant byte address 0x4 - core index']
  #allocation1 [shape = 'u32[144,128]{1,0:T(1,128)}', space=vmem, size = 0x12000, scoped, tag = 'internal scratch']
  #allocation2 [shape = 'f32[8,128]{1,0:T(8,128)}', space=vmem, size = 0x1000, scoped, tag = 'scratch operand']
  #allocation3 [shape = 'f32[8,128]{1,0:T(8,128)}', space=vmem, size = 0x1000, scoped, tag = 'scratch operand']
  #allocation4 [shape = 'f32[8,8,128]{2,1,0:T(8,128)}', space=vmem, size = 0x8000, scoped, tag = 'scratch operand']
  %s0 = inlined_call_operand.hbm [shape: bf16[8,8,512], index: 0, kind: input, shape index: {}]
  %s1 = inlined_call_operand.hbm [shape: bf16[128,512], index: 1, kind: input, shape index: {}]
  %s2 = inlined_call_operand.hbm [shape: bf16[128,128], index: 2, kind: input, shape index: {}]
  %s3 = inlined_call_operand.vmem [shape: f32[1,128], index: 3, kind: input, shape index: {}]
  %s4 = inlined_call_operand.hbm [shape: f32[8,8,128], index: 4, kind: output, shape index: {}]
  %s5 = sld [smem:[#allocation0]]
  $region42: #{tpu_custom_call.1} parent=0
    _
  %s7 = ssub.s32 1, %s5
  %s8 = scalar_select 0, %s7, %s5
  $region1: #{tpu_custom_call.1} parent=0
    #allocation5 [shape = 'u8[65536]{0}', space=vmem, size = 0x10000, scoped, tag = 'input window, operand 0, single buffered']
    #allocation6 [shape = 's32[1]{0}', space=sflag, size = 0x4, scoped, tag = 'scoped memory for tpu_custom_call.1']
    #allocation7 [shape = 's32[1]{0}', space=sflag, size = 0x4, scoped, tag = 'scoped memory for tpu_custom_call.1']
    #allocation8 [shape = 'u8[131072]{0}', space=vmem, size = 0x20000, scoped, tag = 'input window, operand 1, single buffered']
    #allocation9 [shape = 's32[1]{0}', space=sflag, size = 0x4, scoped, tag = 'scoped memory for tpu_custom_call.1']
    #allocation10 [shape = 'u8[32768]{0}', space=vmem, size = 0x8000, scoped, tag = 'input window, operand 2, single buffered']
    #allocation11 [shape = 'u8[32768]{0}', space=vmem, size = 0x8000, scoped, tag = 'output window, operand 0, single buffered']
    %9 = vsyncpa [#allocation6], 0
    %10 = vsyncpa [#allocation9], 0
    %11 = vsyncpa [#allocation7], 0
    // Predicated region
    $region2: #{tpu_custom_call.1} parent=1 // pred_check
      _
    $region3: #{tpu_custom_call.1} parent=1 // pred_check_branch
      %13 = sbr.rel (0) target = $region5
    $region4: #{tpu_custom_call.1} parent=1 // pred_region
      %s15 = ssub.s32 2048, 2048
      %16 = vsyncadd [#allocation6], %s15
      %s17 = sshll.u32 [#allocation5], 4
      %s18 = int_to_ptr.vmem [resolvable:$true] %s17
      %23 = dma.hbm_to_vmem [thread:$0]  %s0, 2048, %s18, [#allocation6], 256, 256, 16
    $region5: #{tpu_custom_call.1} parent=1 // pred_fallthru
      _
    // Predicated region
    $region6: #{tpu_custom_call.1} parent=1 // pred_check
      _
    $region7: #{tpu_custom_call.1} parent=1 // pred_check_branch
      %25 = sbr.rel (0) target = $region9
    $region8: #{tpu_custom_call.1} parent=1 // pred_region
      %s27 = ssub.s32 4096, 4096
      %28 = vsyncadd [#allocation9], %s27
      %s29 = sshll.u32 [#allocation8], 4
      %s30 = int_to_ptr.vmem [resolvable:$true] %s29
      %35 = dma.hbm_to_vmem [thread:$0]  %s1, 4096, %s30, [#allocation9], 256, 256, 16
    $region9: #{tpu_custom_call.1} parent=1 // pred_fallthru
      _
    // Predicated region
    $region10: #{tpu_custom_call.1} parent=1 // pred_check
      _
    $region11: #{tpu_custom_call.1} parent=1 // pred_check_branch
      %37 = sbr.rel (0) target = $region13
    $region12: #{tpu_custom_call.1} parent=1 // pred_region
      %s39 = ssub.s32 1024, 1024
      %40 = vsyncadd [#allocation9], %s39
      %s41 = sshll.u32 [#allocation10], 4
      %s42 = int_to_ptr.vmem [resolvable:$true] %s41
      %47 = dma.hbm_to_vmem [thread:$0]  %s2, 1024, %s42, [#allocation9], 64, 64, 4
    $region13: #{tpu_custom_call.1} parent=1 // pred_fallthru
      _
    // Predicated region
    $region14: #{tpu_custom_call.1} parent=1 // pred_check
      _
    $region15: #{tpu_custom_call.1} parent=1 // pred_check_branch
      %49 = sbr.rel (0) target = $region17
    $region16: #{tpu_custom_call.1} parent=1 // pred_region
      _
    $region17: #{tpu_custom_call.1} parent=1 // pred_fallthru
      _
    // Predicated region
    $region18: #{tpu_custom_call.1} parent=1 // pred_check
      _
    $region19: #{tpu_custom_call.1} parent=1 // pred_check_branch
      %51 = sbr.rel (0) target = $region21
    $region20: #{tpu_custom_call.1} parent=1 // pred_region
      %52 = dma.done [#allocation6], 2048
    $region21: #{tpu_custom_call.1} parent=1 // pred_fallthru
      _
    // Predicated region
    $region22: #{tpu_custom_call.1} parent=1 // pred_check
      _
    $region23: #{tpu_custom_call.1} parent=1 // pred_check_branch
      %54 = sbr.rel (0) target = $region25
    $region24: #{tpu_custom_call.1} parent=1 // pred_region
      %55 = dma.done [#allocation9], 4096
    $region25: #{tpu_custom_call.1} parent=1 // pred_fallthru
      _
    // Predicated region
    $region26: #{tpu_custom_call.1} parent=1 // pred_check
      _
    $region27: #{tpu_custom_call.1} parent=1 // pred_check_branch
      %57 = sbr.rel (0) target = $region29
    $region28: #{tpu_custom_call.1} parent=1 // pred_region
      %58 = dma.done [#allocation9], 1024
    $region29: #{tpu_custom_call.1} parent=1 // pred_fallthru
      _
    %p60 = scmp.eq.s32.totalorder 0, 0
    // Predicated region
    $region30: #{tpu_custom_call.1} parent=1 // pred_check
      %p61 = pneg %p60
    $region31: #{tpu_custom_call.1} parent=1 // pred_check_branch
      %63 = sbr.rel (%p61) target = $region33
    $region32: #{tpu_custom_call.1} parent=1 // pred_region
      %64 = vst [vmem:[#allocation2] sm:$0xff] 0.0
      %65 = vst [vmem:[#allocation3] sm:$0xff] 0.0
    $region33: #{tpu_custom_call.1} parent=1 // pred_fallthru
      _
    %v66 = vld [vmem:[#allocation2] sm:$0xff]
    %v67 = vld [vmem:[#allocation3] sm:$0xff]
    %v68 = vld [vmem:[#allocation5] sm:$0xff]
    %v69 = vld [vmem:[#allocation5 + $0x8] sm:$0xff]
    %v70 = vunpack.c.l.bf16 %v68
    %v71 = vunpack.c.h.bf16 %v68
    %v72 = vunpack.c.l.bf16 %v69
    %v73 = vunpack.c.h.bf16 %v69
    %v74 = vpack.c.bf16 %v66, %v66
    %v75 = vld [vmem:[#allocation8] sm:$0xff]
    %v76 = vld [vmem:[#allocation8 + $0x8] sm:$0xff]
    %v77 = vld [vmem:[#allocation8 + $0x10] sm:$0xff]
    %v78 = vld [vmem:[#allocation8 + $0x18] sm:$0xff]
    %v79 = vld [vmem:[#allocation8 + $0x20] sm:$0xff]
    %v80 = vld [vmem:[#allocation8 + $0x28] sm:$0xff]
    %v81 = vld [vmem:[#allocation8 + $0x30] sm:$0xff]
    %v82 = vld [vmem:[#allocation8 + $0x38] sm:$0xff]
    %v83 = vld [vmem:[#allocation8 + $0x40] sm:$0xff]
    %v84 = vld [vmem:[#allocation8 + $0x48] sm:$0xff]
    %v85 = vld [vmem:[#allocation8 + $0x50] sm:$0xff]
    %v86 = vld [vmem:[#allocation8 + $0x58] sm:$0xff]
    %v87 = vld [vmem:[#allocation8 + $0x60] sm:$0xff]
    %v88 = vld [vmem:[#allocation8 + $0x68] sm:$0xff]
    %v89 = vld [vmem:[#allocation8 + $0x70] sm:$0xff]
    %v90 = vld [vmem:[#allocation8 + $0x78] sm:$0xff]
    %v91 = vld [vmem:[#allocation8 + $0x80] sm:$0xff]
    %v92 = vld [vmem:[#allocation8 + $0x88] sm:$0xff]
    %v93 = vld [vmem:[#allocation8 + $0x90] sm:$0xff]
    %v94 = vld [vmem:[#allocation8 + $0x98] sm:$0xff]
    %v95 = vld [vmem:[#allocation8 + $0xa0] sm:$0xff]
    %v96 = vld [vmem:[#allocation8 + $0xa8] sm:$0xff]
    %v97 = vld [vmem:[#allocation8 + $0xb0] sm:$0xff]
    %v98 = vld [vmem:[#allocation8 + $0xb8] sm:$0xff]
    %v99 = vld [vmem:[#allocation8 + $0xc0] sm:$0xff]
    %v100 = vld [vmem:[#allocation8 + $0xc8] sm:$0xff]
    %v101 = vld [vmem:[#allocation8 + $0xd0] sm:$0xff]
    %v102 = vld [vmem:[#allocation8 + $0xd8] sm:$0xff]
    %v103 = vld [vmem:[#allocation8 + $0xe0] sm:$0xff]
    %v104 = vld [vmem:[#allocation8 + $0xe8] sm:$0xff]
    %v105 = vld [vmem:[#allocation8 + $0xf0] sm:$0xff]
    %v106 = vld [vmem:[#allocation8 + $0xf8] sm:$0xff]
    %v139 = vunpack.c.l.b16 %v75
    %v140 = vunpack.c.h.b16 %v75
    %v141 = vunpack.c.l.b16 %v76
    %v142 = vunpack.c.h.b16 %v76
    %v143 = vunpack.c.l.b16 %v77
    %v144 = vunpack.c.h.b16 %v77
    %v145 = vunpack.c.l.b16 %v78
    %v146 = vunpack.c.h.b16 %v78
    %v147 = vunpack.c.l.b16 %v79
    %v148 = vunpack.c.h.b16 %v79
    %v149 = vunpack.c.l.b16 %v80
    %v150 = vunpack.c.h.b16 %v80
    %v151 = vunpack.c.l.b16 %v81
    %v152 = vunpack.c.h.b16 %v81
    %v153 = vunpack.c.l.b16 %v82
    %v154 = vunpack.c.h.b16 %v82
    %v155 = vunpack.c.l.b16 %v83
    %v156 = vunpack.c.h.b16 %v83
    %v157 = vunpack.c.l.b16 %v84
    %v158 = vunpack.c.h.b16 %v84
    %v159 = vunpack.c.l.b16 %v85
    %v160 = vunpack.c.h.b16 %v85
    %v161 = vunpack.c.l.b16 %v86
    %v162 = vunpack.c.h.b16 %v86
    %v163 = vunpack.c.l.b16 %v87
    %v164 = vunpack.c.h.b16 %v87
    %v165 = vunpack.c.l.b16 %v88
    %v166 = vunpack.c.h.b16 %v88
    %v167 = vunpack.c.l.b16 %v89
    %v168 = vunpack.c.h.b16 %v89
    %v169 = vunpack.c.l.b16 %v90
    %v170 = vunpack.c.h.b16 %v90
    %v171 = vunpack.c.l.b16 %v91
    %v172 = vunpack.c.h.b16 %v91
    %v173 = vunpack.c.l.b16 %v92
    %v174 = vunpack.c.h.b16 %v92
    %v175 = vunpack.c.l.b16 %v93
    %v176 = vunpack.c.h.b16 %v93
    %v177 = vunpack.c.l.b16 %v94
    %v178 = vunpack.c.h.b16 %v94
    %v179 = vunpack.c.l.b16 %v95
    %v180 = vunpack.c.h.b16 %v95
    %v181 = vunpack.c.l.b16 %v96
    %v182 = vunpack.c.h.b16 %v96
    %v183 = vunpack.c.l.b16 %v97
    %v184 = vunpack.c.h.b16 %v97
    %v185 = vunpack.c.l.b16 %v98
    %v186 = vunpack.c.h.b16 %v98
    %v187 = vunpack.c.l.b16 %v99
    %v188 = vunpack.c.h.b16 %v99
    %v189 = vunpack.c.l.b16 %v100
    %v190 = vunpack.c.h.b16 %v100
    %v191 = vunpack.c.l.b16 %v101
    %v192 = vunpack.c.h.b16 %v101
    %v193 = vunpack.c.l.b16 %v102
    %v194 = vunpack.c.h.b16 %v102
    %v195 = vunpack.c.l.b16 %v103
    %v196 = vunpack.c.h.b16 %v103
    %v197 = vunpack.c.l.b16 %v104
    %v198 = vunpack.c.h.b16 %v104
    %v199 = vunpack.c.l.b16 %v105
    %v200 = vunpack.c.h.b16 %v105
    %v201 = vunpack.c.l.b16 %v106
    %v202 = vunpack.c.h.b16 %v106
    %v203 = vpack.c.b16 %v143, %v139
    %v204 = vpack.c.b16 %v144, %v140
    %v205 = vpack.c.b16 %v145, %v141
    %v206 = vpack.c.b16 %v146, %v142
    %v207 = vpack.c.b16 %v151, %v147
    %v208 = vpack.c.b16 %v152, %v148
    %v209 = vpack.c.b16 %v153, %v149
    %v210 = vpack.c.b16 %v154, %v150
    %v211 = vpack.c.b16 %v159, %v155
    %v212 = vpack.c.b16 %v160, %v156
    %v213 = vpack.c.b16 %v161, %v157
    %v214 = vpack.c.b16 %v162, %v158
    %v215 = vpack.c.b16 %v167, %v163
    %v216 = vpack.c.b16 %v168, %v164
    %v217 = vpack.c.b16 %v169, %v165
    %v218 = vpack.c.b16 %v170, %v166
    %v219 = vpack.c.b16 %v175, %v171
    %v220 = vpack.c.b16 %v176, %v172
    %v221 = vpack.c.b16 %v177, %v173
    %v222 = vpack.c.b16 %v178, %v174
    %v223 = vpack.c.b16 %v183, %v179
    %v224 = vpack.c.b16 %v184, %v180
    %v225 = vpack.c.b16 %v185, %v181
    %v226 = vpack.c.b16 %v186, %v182
    %v227 = vpack.c.b16 %v191, %v187
    %v228 = vpack.c.b16 %v192, %v188
    %v229 = vpack.c.b16 %v193, %v189
    %v230 = vpack.c.b16 %v194, %v190
    %v231 = vpack.c.b16 %v199, %v195
    %v232 = vpack.c.b16 %v200, %v196
    %v233 = vpack.c.b16 %v201, %v197
    %v234 = vpack.c.b16 %v202, %v198
    %267 = vmatprep.subr.bf16.mxu0 %v204
    %268 = vmatpush1.bf16.msra.mxu0 %v203
    %269 = vmatprep.subr.bf16.mxu0 %v208
    %270 = vmatpush1.bf16.msra.mxu0 %v207
    %271 = vmatprep.subr.bf16.mxu0 %v212
    %272 = vmatpush1.bf16.msra.mxu0 %v211
    %273 = vmatprep.subr.bf16.mxu0 %v216
    %274 = vmatpush1.bf16.msra.mxu0 %v215
    %275 = vmatprep.subr.bf16.mxu0 %v220
    %276 = vmatpush1.bf16.msra.mxu0 %v219
    %277 = vmatprep.subr.bf16.mxu0 %v224
    %278 = vmatpush1.bf16.msra.mxu0 %v223
    %279 = vmatprep.subr.bf16.mxu0 %v228
    %280 = vmatpush1.bf16.msra.mxu0 %v227
    %281 = vmatprep.subr.bf16.mxu0 %v232
    %282 = vmatpush1.bf16.msra.mxu0 %v231
    %283 = vmatprep.subr.bf16.mxu0 0
    %284 = vmatpush1.bf16.msra.mxu0 0
    %285 = vmatprep.subr.bf16.mxu0 0
    %286 = vmatpush1.bf16.msra.mxu0 0
    %287 = vmatprep.subr.bf16.mxu0 0
    %288 = vmatpush1.bf16.msra.mxu0 0
    %289 = vmatprep.subr.bf16.mxu0 0
    %290 = vmatpush1.bf16.msra.mxu0 0
    %291 = vmatprep.subr.bf16.mxu0 0
    %292 = vmatpush1.bf16.msra.mxu0 0
    %293 = vmatprep.subr.bf16.mxu0 0
    %294 = vmatpush1.bf16.msra.mxu0 0
    %295 = vmatprep.subr.bf16.mxu0 0
    %296 = vmatpush1.bf16.msra.mxu0 0
    %297 = vmatprep.subr.bf16.mxu0 0
    %298 = vmatpush1.bf16.msra.mxu0 0
    %299 = vmatprep.mubr.bf16.mxu0 0
    %300 = vmatmul.mubr.bf16.gmra.mrb[0].mxu0 %v74
    %v301 = vpop.f32.mrb[0].mxu0
    %v302 = vadd.f32 0.0, %v301
    %v303 = vpop.f32.mrb[0].mxu0
    %v304 = vadd.f32 0.0, %v303
    %v305 = vpop.f32.mrb[0].mxu0
    %v306 = vpop.f32.mrb[0].mxu0
    %307 = vdwg.mxu0
    %308 = vmatprep.subr.bf16.mxu0 %v206
    %309 = vmatpush1.bf16.msra.mxu0 %v205
    %310 = vmatprep.subr.bf16.mxu0 %v210
    %311 = vmatpush1.bf16.msra.mxu0 %v209
    %312 = vmatprep.subr.bf16.mxu0 %v214
    %313 = vmatpush1.bf16.msra.mxu0 %v213
    %314 = vmatprep.subr.bf16.mxu0 %v218
    %315 = vmatpush1.bf16.msra.mxu0 %v217
    %316 = vmatprep.subr.bf16.mxu0 %v222
    %317 = vmatpush1.bf16.msra.mxu0 %v221
    %318 = vmatprep.subr.bf16.mxu0 %v226
    %319 = vmatpush1.bf16.msra.mxu0 %v225
    %320 = vmatprep.subr.bf16.mxu0 %v230
    %321 = vmatpush1.bf16.msra.mxu0 %v229
    %322 = vmatprep.subr.bf16.mxu0 %v234
    %323 = vmatpush1.bf16.msra.mxu0 %v233
    %324 = vmatprep.subr.bf16.mxu0 0
    %325 = vmatpush1.bf16.msra.mxu0 0
    %326 = vmatprep.subr.bf16.mxu0 0
    %327 = vmatpush1.bf16.msra.mxu0 0
    %328 = vmatprep.subr.bf16.mxu0 0
    %329 = vmatpush1.bf16.msra.mxu0 0
    %330 = vmatprep.subr.bf16.mxu0 0
    %331 = vmatpush1.bf16.msra.mxu0 0
    %332 = vmatprep.subr.bf16.mxu0 0
    %333 = vmatpush1.bf16.msra.mxu0 0
    %334 = vmatprep.subr.bf16.mxu0 0
    %335 = vmatpush1.bf16.msra.mxu0 0
    %336 = vmatprep.subr.bf16.mxu0 0
    %337 = vmatpush1.bf16.msra.mxu0 0
    %338 = vmatprep.subr.bf16.mxu0 0
    %339 = vmatpush1.bf16.msra.mxu0 0
    %340 = vmatprep.mubr.bf16.mxu0 0
    %341 = vmatmul.mubr.bf16.gmra.mrb[0].mxu0 %v74
    %v342 = vpop.f32.mrb[0].mxu0
    %v343 = vadd.f32 0.0, %v342
    %v344 = vpop.f32.mrb[0].mxu0
    %v345 = vadd.f32 0.0, %v344
    %v346 = vpop.f32.mrb[0].mxu0
    %v347 = vpop.f32.mrb[0].mxu0
    %348 = vdwg.mxu0
    %v349 = vadd.f32 %v70, %v302
    %v350 = vadd.f32 %v71, %v304
    %v351 = vadd.f32 %v72, %v343
    %v352 = vadd.f32 %v73, %v345
    %v353 = vxor.u32 %v349, 2147483648
    %v354 = vxor.u32 %v350, 2147483648
    %v355 = vxor.u32 %v351, 2147483648
    %v356 = vmul.f32 %v353, 1.442695
    %v357 = vpow.pop %v356
    %v358 = vmul.f32 %v354, 1.442695
    %v359 = vpow.pop %v358
    %v360 = vmul.f32 %v355, 1.442695
    %v361 = vpow.pop %v360
    %v362 = vadd.f32 %v357, 1.0
    %v363 = vadd.f32 %v359, 1.0
    %v364 = vadd.f32 %v361, 1.0
    %v365 = vrcp.pop %v362
    %v366 = vmul.f32 1.0, %v365
    %v367 = vrcp.pop %v363
    %v368 = vmul.f32 1.0, %v367
    %v369 = vrcp.pop %v364
    %v370 = vmul.f32 1.0, %v369
    %v371 = vtanh.pop %v352
    %v372 = vmul.f32 %v368, %v67
    %v373 = vmul.f32 %v366, %v371
    %v374 = vadd.f32 %v372, %v373
    %v375 = vtanh.pop %v374
    %v376 = vmul.f32 %v370, %v375
    %377 = vst [vmem:[#allocation4] sm:$0xff] %v376
    %s378 = scalar_lea.vmem [#allocation5], 16
    %v379 = vld [vmem:[%s378] sm:$0xff]
    %v380 = vld [vmem:[%s378 + $0x8] sm:$0xff]
    %v381 = vunpack.c.l.bf16 %v379
    %v382 = vunpack.c.h.bf16 %v379
    %v383 = vunpack.c.l.bf16 %v380
    %v384 = vunpack.c.h.bf16 %v380
    %v385 = vpack.c.bf16 %v376, %v376
    %v386 = vld [vmem:[#allocation8] sm:$0xff]
    %v387 = vld [vmem:[#allocation8 + $0x8] sm:$0xff]
    %v388 = vld [vmem:[#allocation8 + $0x10] sm:$0xff]
    %v389 = vld [vmem:[#allocation8 + $0x18] sm:$0xff]
    %v390 = vld [vmem:[#allocation8 + $0x20] sm:$0xff]
    %v391 = vld [vmem:[#allocation8 + $0x28] sm:$0xff]
    %v392 = vld [vmem:[#allocation8 + $0x30] sm:$0xff]
    %v393 = vld [vmem:[#allocation8 + $0x38] sm:$0xff]
    %v394 = vld [vmem:[#allocation8 + $0x40] sm:$0xff]
    %v395 = vld [vmem:[#allocation8 + $0x48] sm:$0xff]
    %v396 = vld [vmem:[#allocation8 + $0x50] sm:$0xff]
    %v397 = vld [vmem:[#allocation8 + $0x58] sm:$0xff]
    %v398 = vld [vmem:[#allocation8 + $0x60] sm:$0xff]
    %v399 = vld [vmem:[#allocation8 + $0x68] sm:$0xff]
    %v400 = vld [vmem:[#allocation8 + $0x70] sm:$0xff]
    %v401 = vld [vmem:[#allocation8 + $0x78] sm:$0xff]
    %v402 = vld [vmem:[#allocation8 + $0x80] sm:$0xff]
    %v403 = vld [vmem:[#allocation8 + $0x88] sm:$0xff]
    %v404 = vld [vmem:[#allocation8 + $0x90] sm:$0xff]
    %v405 = vld [vmem:[#allocation8 + $0x98] sm:$0xff]
    %v406 = vld [vmem:[#allocation8 + $0xa0] sm:$0xff]
    %v407 = vld [vmem:[#allocation8 + $0xa8] sm:$0xff]
    %v408 = vld [vmem:[#allocation8 + $0xb0] sm:$0xff]
    %v409 = vld [vmem:[#allocation8 + $0xb8] sm:$0xff]
    %v410 = vld [vmem:[#allocation8 + $0xc0] sm:$0xff]
    %v411 = vld [vmem:[#allocation8 + $0xc8] sm:$0xff]
    %v412 = vld [vmem:[#allocation8 + $0xd0] sm:$0xff]
    %v413 = vld [vmem:[#allocation8 + $0xd8] sm:$0xff]
    %v414 = vld [vmem:[#allocation8 + $0xe0] sm:$0xff]
    %v415 = vld [vmem:[#allocation8 + $0xe8] sm:$0xff]
    %v416 = vld [vmem:[#allocation8 + $0xf0] sm:$0xff]
    %v417 = vld [vmem:[#allocation8 + $0xf8] sm:$0xff]
    %v450 = vunpack.c.l.b16 %v386
    %v451 = vunpack.c.h.b16 %v386
    %v452 = vunpack.c.l.b16 %v387
    %v453 = vunpack.c.h.b16 %v387
    %v454 = vunpack.c.l.b16 %v388
    %v455 = vunpack.c.h.b16 %v388
    %v456 = vunpack.c.l.b16 %v389
    %v457 = vunpack.c.h.b16 %v389
    %v458 = vunpack.c.l.b16 %v390
    %v459 = vunpack.c.h.b16 %v390
    %v460 = vunpack.c.l.b16 %v391
    %v461 = vunpack.c.h.b16 %v391
    %v462 = vunpack.c.l.b16 %v392
    %v463 = vunpack.c.h.b16 %v392
    %v464 = vunpack.c.l.b16 %v393
    %v465 = vunpack.c.h.b16 %v393
    %v466 = vunpack.c.l.b16 %v394
    %v467 = vunpack.c.h.b16 %v394
    %v468 = vunpack.c.l.b16 %v395
    %v469 = vunpack.c.h.b16 %v395
    %v470 = vunpack.c.l.b16 %v396
    %v471 = vunpack.c.h.b16 %v396
    %v472 = vunpack.c.l.b16 %v397
    %v473 = vunpack.c.h.b16 %v397
    %v474 = vunpack.c.l.b16 %v398
    %v475 = vunpack.c.h.b16 %v398
    %v476 = vunpack.c.l.b16 %v399
    %v477 = vunpack.c.h.b16 %v399
    %v478 = vunpack.c.l.b16 %v400
    %v479 = vunpack.c.h.b16 %v400
    %v480 = vunpack.c.l.b16 %v401
    %v481 = vunpack.c.h.b16 %v401
    %v482 = vunpack.c.l.b16 %v402
    %v483 = vunpack.c.h.b16 %v402
    %v484 = vunpack.c.l.b16 %v403
    %v485 = vunpack.c.h.b16 %v403
    %v486 = vunpack.c.l.b16 %v404
    %v487 = vunpack.c.h.b16 %v404
    %v488 = vunpack.c.l.b16 %v405
    %v489 = vunpack.c.h.b16 %v405
    %v490 = vunpack.c.l.b16 %v406
    %v491 = vunpack.c.h.b16 %v406
    %v492 = vunpack.c.l.b16 %v407
    %v493 = vunpack.c.h.b16 %v407
    %v494 = vunpack.c.l.b16 %v408
    %v495 = vunpack.c.h.b16 %v408
    %v496 = vunpack.c.l.b16 %v409
    %v497 = vunpack.c.h.b16 %v409
    %v498 = vunpack.c.l.b16 %v410
    %v499 = vunpack.c.h.b16 %v410
    %v500 = vunpack.c.l.b16 %v411
    %v501 = vunpack.c.h.b16 %v411
    %v502 = vunpack.c.l.b16 %v412
    %v503 = vunpack.c.h.b16 %v412
    %v504 = vunpack.c.l.b16 %v413
    %v505 = vunpack.c.h.b16 %v413
    %v506 = vunpack.c.l.b16 %v414
    %v507 = vunpack.c.h.b16 %v414
    %v508 = vunpack.c.l.b16 %v415
    %v509 = vunpack.c.h.b16 %v415
    %v510 = vunpack.c.l.b16 %v416
    %v511 = vunpack.c.h.b16 %v416
    %v512 = vunpack.c.l.b16 %v417
    %v513 = vunpack.c.h.b16 %v417
    %v514 = vpack.c.b16 %v454, %v450
    %v515 = vpack.c.b16 %v455, %v451
    %v516 = vpack.c.b16 %v456, %v452
    %v517 = vpack.c.b16 %v457, %v453
    %v518 = vpack.c.b16 %v462, %v458
    %v519 = vpack.c.b16 %v463, %v459
    %v520 = vpack.c.b16 %v464, %v460
    %v521 = vpack.c.b16 %v465, %v461
    %v522 = vpack.c.b16 %v470, %v466
    %v523 = vpack.c.b16 %v471, %v467
    %v524 = vpack.c.b16 %v472, %v468
    %v525 = vpack.c.b16 %v473, %v469
    %v526 = vpack.c.b16 %v478, %v474
    %v527 = vpack.c.b16 %v479, %v475
    %v528 = vpack.c.b16 %v480, %v476
    %v529 = vpack.c.b16 %v481, %v477
    %v530 = vpack.c.b16 %v486, %v482
    %v531 = vpack.c.b16 %v487, %v483
    %v532 = vpack.c.b16 %v488, %v484
    %v533 = vpack.c.b16 %v489, %v485
    %v534 = vpack.c.b16 %v494, %v490
    %v535 = vpack.c.b16 %v495, %v491
    %v536 = vpack.c.b16 %v496, %v492
    %v537 = vpack.c.b16 %v497, %v493
    %v538 = vpack.c.b16 %v502, %v498
    %v539 = vpack.c.b16 %v503, %v499
    %v540 = vpack.c.b16 %v504, %v500
    %v541 = vpack.c.b16 %v505, %v501
    %v542 = vpack.c.b16 %v510, %v506
    %v543 = vpack.c.b16 %v511, %v507
    %v544 = vpack.c.b16 %v512, %v508
    %v545 = vpack.c.b16 %v513, %v509
    %578 = vmatprep.subr.bf16.mxu0 %v515
    %579 = vmatpush1.bf16.msra.mxu0 %v514
    %580 = vmatprep.subr.bf16.mxu0 %v519
    %581 = vmatpush1.bf16.msra.mxu0 %v518
    %582 = vmatprep.subr.bf16.mxu0 %v523
    %583 = vmatpush1.bf16.msra.mxu0 %v522
    %584 = vmatprep.subr.bf16.mxu0 %v527
    %585 = vmatpush1.bf16.msra.mxu0 %v526
    %586 = vmatprep.subr.bf16.mxu0 %v531
    %587 = vmatpush1.bf16.msra.mxu0 %v530
    %588 = vmatprep.subr.bf16.mxu0 %v535
    %589 = vmatpush1.bf16.msra.mxu0 %v534
    %590 = vmatprep.subr.bf16.mxu0 %v539
    %591 = vmatpush1.bf16.msra.mxu0 %v538
    %592 = vmatprep.subr.bf16.mxu0 %v543
    %593 = vmatpush1.bf16.msra.mxu0 %v542
    %594 = vmatprep.subr.bf16.mxu0 0
    %595 = vmatpush1.bf16.msra.mxu0 0
    %596 = vmatprep.subr.bf16.mxu0 0
    %597 = vmatpush1.bf16.msra.mxu0 0
    %598 = vmatprep.subr.bf16.mxu0 0
    %599 = vmatpush1.bf16.msra.mxu0 0
    %600 = vmatprep.subr.bf16.mxu0 0
    %601 = vmatpush1.bf16.msra.mxu0 0
    %602 = vmatprep.subr.bf16.mxu0 0
    %603 = vmatpush1.bf16.msra.mxu0 0
    %604 = vmatprep.subr.bf16.mxu0 0
    %605 = vmatpush1.bf16.msra.mxu0 0
    %606 = vmatprep.subr.bf16.mxu0 0
    %607 = vmatpush1.bf16.msra.mxu0 0
    %608 = vmatprep.subr.bf16.mxu0 0
    %609 = vmatpush1.bf16.msra.mxu0 0
    %610 = vmatprep.mubr.bf16.mxu0 0
    %611 = vmatmul.mubr.bf16.gmra.mrb[0].mxu0 %v385
    %v612 = vpop.f32.mrb[0].mxu0
    %v613 = vadd.f32 0.0, %v612
    %v614 = vpop.f32.mrb[0].mxu0
    %v615 = vadd.f32 0.0, %v614
    %v616 = vpop.f32.mrb[0].mxu0
    %v617 = vpop.f32.mrb[0].mxu0
    %618 = vdwg.mxu0
    %619 = vmatprep.subr.bf16.mxu0 %v517
    %620 = vmatpush1.bf16.msra.mxu0 %v516
    %621 = vmatprep.subr.bf16.mxu0 %v521
    %622 = vmatpush1.bf16.msra.mxu0 %v520
    %623 = vmatprep.subr.bf16.mxu0 %v525
    %624 = vmatpush1.bf16.msra.mxu0 %v524
    %625 = vmatprep.subr.bf16.mxu0 %v529
    %626 = vmatpush1.bf16.msra.mxu0 %v528
    %627 = vmatprep.subr.bf16.mxu0 %v533
    %628 = vmatpush1.bf16.msra.mxu0 %v532
    %629 = vmatprep.subr.bf16.mxu0 %v537
    %630 = vmatpush1.bf16.msra.mxu0 %v536
    %631 = vmatprep.subr.bf16.mxu0 %v541
    %632 = vmatpush1.bf16.msra.mxu0 %v540
    %633 = vmatprep.subr.bf16.mxu0 %v545
    %634 = vmatpush1.bf16.msra.mxu0 %v544
    %635 = vmatprep.subr.bf16.mxu0 0
    %636 = vmatpush1.bf16.msra.mxu0 0
    %637 = vmatprep.subr.bf16.mxu0 0
    %638 = vmatpush1.bf16.msra.mxu0 0
    %639 = vmatprep.subr.bf16.mxu0 0
    %640 = vmatpush1.bf16.msra.mxu0 0
    %641 = vmatprep.subr.bf16.mxu0 0
    %642 = vmatpush1.bf16.msra.mxu0 0
    %643 = vmatprep.subr.bf16.mxu0 0
    %644 = vmatpush1.bf16.msra.mxu0 0
    %645 = vmatprep.subr.bf16.mxu0 0
    %646 = vmatpush1.bf16.msra.mxu0 0
    %647 = vmatprep.subr.bf16.mxu0 0
    %648 = vmatpush1.bf16.msra.mxu0 0
    %649 = vmatprep.subr.bf16.mxu0 0
    %650 = vmatpush1.bf16.msra.mxu0 0
    %651 = vmatprep.mubr.bf16.mxu0 0
    %652 = vmatmul.mubr.bf16.gmra.mrb[0].mxu0 %v385
    %v653 = vpop.f32.mrb[0].mxu0
    %v654 = vadd.f32 0.0, %v653
    %v655 = vpop.f32.mrb[0].mxu0
    %v656 = vadd.f32 0.0, %v655
    %v657 = vpop.f32.mrb[0].mxu0
    %v658 = vpop.f32.mrb[0].mxu0
    %659 = vdwg.mxu0
    %v660 = vadd.f32 %v381, %v613
    %v661 = vadd.f32 %v382, %v615
    %v662 = vadd.f32 %v383, %v654
    %v663 = vadd.f32 %v384, %v656
    %v664 = vxor.u32 %v660, 2147483648
    %v665 = vxor.u32 %v661, 2147483648
    %v666 = vxor.u32 %v662, 2147483648
    %v667 = vmul.f32 %v664, 1.442695
    %v668 = vpow.pop %v667
    %v669 = vmul.f32 %v665, 1.442695
    %v670 = vpow.pop %v669
    %v671 = vmul.f32 %v666, 1.442695
    %v672 = vpow.pop %v671
    %v673 = vadd.f32 %v668, 1.0
    %v674 = vadd.f32 %v670, 1.0
    %v675 = vadd.f32 %v672, 1.0
    %v676 = vrcp.pop %v673
    %v677 = vmul.f32 1.0, %v676
    %v678 = vrcp.pop %v674
    %v679 = vmul.f32 1.0, %v678
    %v680 = vrcp.pop %v675
    %v681 = vmul.f32 1.0, %v680
    %v682 = vtanh.pop %v663
    %v683 = vmul.f32 %v679, %v374
    %v684 = vmul.f32 %v677, %v682
    %v685 = vadd.f32 %v683, %v684
    %v686 = vtanh.pop %v685
    %v687 = vmul.f32 %v681, %v686
    %s688 = scalar_lea.vmem [#allocation4], 8
    %689 = vst [vmem:[%s688] sm:$0xff] %v687
    %s690 = scalar_lea.vmem [#allocation5], 32
    %v691 = vld [vmem:[%s690] sm:$0xff]
    %v692 = vld [vmem:[%s690 + $0x8] sm:$0xff]
    %v693 = vunpack.c.l.bf16 %v691
    %v694 = vunpack.c.h.bf16 %v691
    %v695 = vunpack.c.l.bf16 %v692
    %v696 = vunpack.c.h.bf16 %v692
    %v697 = vpack.c.bf16 %v687, %v687
    %v698 = vld [vmem:[#allocation8] sm:$0xff]
    %v699 = vld [vmem:[#allocation8 + $0x8] sm:$0xff]
    %v700 = vld [vmem:[#allocation8 + $0x10] sm:$0xff]
    %v701 = vld [vmem:[#allocation8 + $0x18] sm:$0xff]
    %v702 = vld [vmem:[#allocation8 + $0x20] sm:$0xff]
    %v703 = vld [vmem:[#allocation8 + $0x28] sm:$0xff]
    %v704 = vld [vmem:[#allocation8 + $0x30] sm:$0xff]
    %v705 = vld [vmem:[#allocation8 + $0x38] sm:$0xff]
    %v706 = vld [vmem:[#allocation8 + $0x40] sm:$0xff]
    %v707 = vld [vmem:[#allocation8 + $0x48] sm:$0xff]
    %v708 = vld [vmem:[#allocation8 + $0x50] sm:$0xff]
    %v709 = vld [vmem:[#allocation8 + $0x58] sm:$0xff]
    %v710 = vld [vmem:[#allocation8 + $0x60] sm:$0xff]
    %v711 = vld [vmem:[#allocation8 + $0x68] sm:$0xff]
    %v712 = vld [vmem:[#allocation8 + $0x70] sm:$0xff]
    %v713 = vld [vmem:[#allocation8 + $0x78] sm:$0xff]
    %v714 = vld [vmem:[#allocation8 + $0x80] sm:$0xff]
    %v715 = vld [vmem:[#allocation8 + $0x88] sm:$0xff]
    %v716 = vld [vmem:[#allocation8 + $0x90] sm:$0xff]
    %v717 = vld [vmem:[#allocation8 + $0x98] sm:$0xff]
    %v718 = vld [vmem:[#allocation8 + $0xa0] sm:$0xff]
    %v719 = vld [vmem:[#allocation8 + $0xa8] sm:$0xff]
    %v720 = vld [vmem:[#allocation8 + $0xb0] sm:$0xff]
    %v721 = vld [vmem:[#allocation8 + $0xb8] sm:$0xff]
    %v722 = vld [vmem:[#allocation8 + $0xc0] sm:$0xff]
    %v723 = vld [vmem:[#allocation8 + $0xc8] sm:$0xff]
    %v724 = vld [vmem:[#allocation8 + $0xd0] sm:$0xff]
    %v725 = vld [vmem:[#allocation8 + $0xd8] sm:$0xff]
    %v726 = vld [vmem:[#allocation8 + $0xe0] sm:$0xff]
    %v727 = vld [vmem:[#allocation8 + $0xe8] sm:$0xff]
    %v728 = vld [vmem:[#allocation8 + $0xf0] sm:$0xff]
    %v729 = vld [vmem:[#allocation8 + $0xf8] sm:$0xff]
    %v762 = vunpack.c.l.b16 %v698
    %v763 = vunpack.c.h.b16 %v698
    %v764 = vunpack.c.l.b16 %v699
    %v765 = vunpack.c.h.b16 %v699
    %v766 = vunpack.c.l.b16 %v700
    %v767 = vunpack.c.h.b16 %v700
    %v768 = vunpack.c.l.b16 %v701
    %v769 = vunpack.c.h.b16 %v701
    %v770 = vunpack.c.l.b16 %v702
    %v771 = vunpack.c.h.b16 %v702
    %v772 = vunpack.c.l.b16 %v703
    %v773 = vunpack.c.h.b16 %v703
    %v774 = vunpack.c.l.b16 %v704
    %v775 = vunpack.c.h.b16 %v704
    %v776 = vunpack.c.l.b16 %v705
    %v777 = vunpack.c.h.b16 %v705
    %v778 = vunpack.c.l.b16 %v706
    %v779 = vunpack.c.h.b16 %v706
    %v780 = vunpack.c.l.b16 %v707
    %v781 = vunpack.c.h.b16 %v707
    %v782 = vunpack.c.l.b16 %v708
    %v783 = vunpack.c.h.b16 %v708
    %v784 = vunpack.c.l.b16 %v709
    %v785 = vunpack.c.h.b16 %v709
    %v786 = vunpack.c.l.b16 %v710
    %v787 = vunpack.c.h.b16 %v710
    %v788 = vunpack.c.l.b16 %v711
    %v789 = vunpack.c.h.b16 %v711
    %v790 = vunpack.c.l.b16 %v712
    %v791 = vunpack.c.h.b16 %v712
    %v792 = vunpack.c.l.b16 %v713
    %v793 = vunpack.c.h.b16 %v713
    %v794 = vunpack.c.l.b16 %v714
    %v795 = vunpack.c.h.b16 %v714
    %v796 = vunpack.c.l.b16 %v715
    %v797 = vunpack.c.h.b16 %v715
    %v798 = vunpack.c.l.b16 %v716
    %v799 = vunpack.c.h.b16 %v716
    %v800 = vunpack.c.l.b16 %v717
    %v801 = vunpack.c.h.b16 %v717
    %v802 = vunpack.c.l.b16 %v718
    %v803 = vunpack.c.h.b16 %v718
    %v804 = vunpack.c.l.b16 %v719
    %v805 = vunpack.c.h.b16 %v719
    %v806 = vunpack.c.l.b16 %v720
    %v807 = vunpack.c.h.b16 %v720
    %v808 = vunpack.c.l.b16 %v721
    %v809 = vunpack.c.h.b16 %v721
    %v810 = vunpack.c.l.b16 %v722
    %v811 = vunpack.c.h.b16 %v722
    %v812 = vunpack.c.l.b16 %v723
    %v813 = vunpack.c.h.b16 %v723
    %v814 = vunpack.c.l.b16 %v724
    %v815 = vunpack.c.h.b16 %v724
    %v816 = vunpack.c.l.b16 %v725
    %v817 = vunpack.c.h.b16 %v725
    %v818 = vunpack.c.l.b16 %v726
    %v819 = vunpack.c.h.b16 %v726
    %v820 = vunpack.c.l.b16 %v727
    %v821 = vunpack.c.h.b16 %v727
    %v822 = vunpack.c.l.b16 %v728
    %v823 = vunpack.c.h.b16 %v728
    %v824 = vunpack.c.l.b16 %v729
    %v825 = vunpack.c.h.b16 %v729
    %v826 = vpack.c.b16 %v766, %v762
    %v827 = vpack.c.b16 %v767, %v763
    %v828 = vpack.c.b16 %v768, %v764
    %v829 = vpack.c.b16 %v769, %v765
    %v830 = vpack.c.b16 %v774, %v770
    %v831 = vpack.c.b16 %v775, %v771
    %v832 = vpack.c.b16 %v776, %v772
    %v833 = vpack.c.b16 %v777, %v773
    %v834 = vpack.c.b16 %v782, %v778
    %v835 = vpack.c.b16 %v783, %v779
    %v836 = vpack.c.b16 %v784, %v780
    %v837 = vpack.c.b16 %v785, %v781
    %v838 = vpack.c.b16 %v790, %v786
    %v839 = vpack.c.b16 %v791, %v787
    %v840 = vpack.c.b16 %v792, %v788
    %v841 = vpack.c.b16 %v793, %v789
    %v842 = vpack.c.b16 %v798, %v794
    %v843 = vpack.c.b16 %v799, %v795
    %v844 = vpack.c.b16 %v800, %v796
    %v845 = vpack.c.b16 %v801, %v797
    %v846 = vpack.c.b16 %v806, %v802
    %v847 = vpack.c.b16 %v807, %v803
    %v848 = vpack.c.b16 %v808, %v804
    %v849 = vpack.c.b16 %v809, %v805
    %v850 = vpack.c.b16 %v814, %v810
    %v851 = vpack.c.b16 %v815, %v811
    %v852 = vpack.c.b16 %v816, %v812
    %v853 = vpack.c.b16 %v817, %v813
    %v854 = vpack.c.b16 %v822, %v818
    %v855 = vpack.c.b16 %v823, %v819
    %v856 = vpack.c.b16 %v824, %v820
    %v857 = vpack.c.b16 %v825, %v821
    %890 = vmatprep.subr.bf16.mxu0 %v827
    %891 = vmatpush1.bf16.msra.mxu0 %v826
    %892 = vmatprep.subr.bf16.mxu0 %v831
    %893 = vmatpush1.bf16.msra.mxu0 %v830
    %894 = vmatprep.subr.bf16.mxu0 %v835
    %895 = vmatpush1.bf16.msra.mxu0 %v834
    %896 = vmatprep.subr.bf16.mxu0 %v839
    %897 = vmatpush1.bf16.msra.mxu0 %v838
    %898 = vmatprep.subr.bf16.mxu0 %v843
    %899 = vmatpush1.bf16.msra.mxu0 %v842
    %900 = vmatprep.subr.bf16.mxu0 %v847
    %901 = vmatpush1.bf16.msra.mxu0 %v846
    %902 = vmatprep.subr.bf16.mxu0 %v851
    %903 = vmatpush1.bf16.msra.mxu0 %v850
    %904 = vmatprep.subr.bf16.mxu0 %v855
    %905 = vmatpush1.bf16.msra.mxu0 %v854
    %906 = vmatprep.subr.bf16.mxu0 0
    %907 = vmatpush1.bf16.msra.mxu0 0
    %908 = vmatprep.subr.bf16.mxu0 0
    %909 = vmatpush1.bf16.msra.mxu0 0
    %910 = vmatprep.subr.bf16.mxu0 0
    %911 = vmatpush1.bf16.msra.mxu0 0
    %912 = vmatprep.subr.bf16.mxu0 0
    %913 = vmatpush1.bf16.msra.mxu0 0
    %914 = vmatprep.subr.bf16.mxu0 0
    %915 = vmatpush1.bf16.msra.mxu0 0
    %916 = vmatprep.subr.bf16.mxu0 0
    %917 = vmatpush1.bf16.msra.mxu0 0
    %918 = vmatprep.subr.bf16.mxu0 0
    %919 = vmatpush1.bf16.msra.mxu0 0
    %920 = vmatprep.subr.bf16.mxu0 0
    %921 = vmatpush1.bf16.msra.mxu0 0
    %922 = vmatprep.mubr.bf16.mxu0 0
    %923 = vmatmul.mubr.bf16.gmra.mrb[0].mxu0 %v697
    %v924 = vpop.f32.mrb[0].mxu0
    %v925 = vadd.f32 0.0, %v924
    %v926 = vpop.f32.mrb[0].mxu0
    %v927 = vadd.f32 0.0, %v926
    %v928 = vpop.f32.mrb[0].mxu0
    %v929 = vpop.f32.mrb[0].mxu0
    %930 = vdwg.mxu0
    %931 = vmatprep.subr.bf16.mxu0 %v829
    %932 = vmatpush1.bf16.msra.mxu0 %v828
    %933 = vmatprep.subr.bf16.mxu0 %v833
    %934 = vmatpush1.bf16.msra.mxu0 %v832
    %935 = vmatprep.subr.bf16.mxu0 %v837
    %936 = vmatpush1.bf16.msra.mxu0 %v836
    %937 = vmatprep.subr.bf16.mxu0 %v841
    %938 = vmatpush1.bf16.msra.mxu0 %v840
    %939 = vmatprep.subr.bf16.mxu0 %v845
    %940 = vmatpush1.bf16.msra.mxu0 %v844
    %941 = vmatprep.subr.bf16.mxu0 %v849
    %942 = vmatpush1.bf16.msra.mxu0 %v848
    %943 = vmatprep.subr.bf16.mxu0 %v853
    %944 = vmatpush1.bf16.msra.mxu0 %v852
    %945 = vmatprep.subr.bf16.mxu0 %v857
    %946 = vmatpush1.bf16.msra.mxu0 %v856
    %947 = vmatprep.subr.bf16.mxu0 0
    %948 = vmatpush1.bf16.msra.mxu0 0
    %949 = vmatprep.subr.bf16.mxu0 0
    %950 = vmatpush1.bf16.msra.mxu0 0
    %951 = vmatprep.subr.bf16.mxu0 0
    %952 = vmatpush1.bf16.msra.mxu0 0
    %953 = vmatprep.subr.bf16.mxu0 0
    %954 = vmatpush1.bf16.msra.mxu0 0
    %955 = vmatprep.subr.bf16.mxu0 0
    %956 = vmatpush1.bf16.msra.mxu0 0
    %957 = vmatprep.subr.bf16.mxu0 0
    %958 = vmatpush1.bf16.msra.mxu0 0
    %959 = vmatprep.subr.bf16.mxu0 0
    %960 = vmatpush1.bf16.msra.mxu0 0
    %961 = vmatprep.subr.bf16.mxu0 0
    %962 = vmatpush1.bf16.msra.mxu0 0
    %963 = vmatprep.mubr.bf16.mxu0 0
    %964 = vmatmul.mubr.bf16.gmra.mrb[0].mxu0 %v697
    %v965 = vpop.f32.mrb[0].mxu0
    %v966 = vadd.f32 0.0, %v965
    %v967 = vpop.f32.mrb[0].mxu0
    %v968 = vadd.f32 0.0, %v967
    %v969 = vpop.f32.mrb[0].mxu0
    %v970 = vpop.f32.mrb[0].mxu0
    %971 = vdwg.mxu0
    %v972 = vadd.f32 %v693, %v925
    %v973 = vadd.f32 %v694, %v927
    %v974 = vadd.f32 %v695, %v966
    %v975 = vadd.f32 %v696, %v968
    %v976 = vxor.u32 %v972, 2147483648
    %v977 = vxor.u32 %v973, 2147483648
    %v978 = vxor.u32 %v974, 2147483648
    %v979 = vmul.f32 %v976, 1.442695
    %v980 = vpow.pop %v979
    %v981 = vmul.f32 %v977, 1.442695
    %v982 = vpow.pop %v981
    %v983 = vmul.f32 %v978, 1.442695
    %v984 = vpow.pop %v983
    %v985 = vadd.f32 %v980, 1.0
    %v986 = vadd.f32 %v982, 1.0
    %v987 = vadd.f32 %v984, 1.0
    %v988 = vrcp.pop %v985
    %v989 = vmul.f32 1.0, %v988
    %v990 = vrcp.pop %v986
    %v991 = vmul.f32 1.0, %v990
    %v992 = vrcp.pop %v987
    %v993 = vmul.f32 1.0, %v992
    %v994 = vtanh.pop %v975
    %v995 = vmul.f32 %v991, %v685
    %v996 = vmul.f32 %v989, %v994
    %v997 = vadd.f32 %v995, %v996
    %v998 = vtanh.pop %v997
    %v999 = vmul.f32 %v993, %v998
    %s1000 = scalar_lea.vmem [#allocation4], 16
    %1001 = vst [vmem:[%s1000] sm:$0xff] %v999
    %s1002 = scalar_lea.vmem [#allocation5], 48
    %v1003 = vld [vmem:[%s1002] sm:$0xff]
    %v1004 = vld [vmem:[%s1002 + $0x8] sm:$0xff]
    %v1005 = vunpack.c.l.bf16 %v1003
    %v1006 = vunpack.c.h.bf16 %v1003
    %v1007 = vunpack.c.l.bf16 %v1004
    %v1008 = vunpack.c.h.bf16 %v1004
    %v1009 = vpack.c.bf16 %v999, %v999
    %v1010 = vld [vmem:[#allocation8] sm:$0xff]
    %v1011 = vld [vmem:[#allocation8 + $0x8] sm:$0xff]
    %v1012 = vld [vmem:[#allocation8 + $0x10] sm:$0xff]
    %v1013 = vld [vmem:[#allocation8 + $0x18] sm:$0xff]
    %v1014 = vld [vmem:[#allocation8 + $0x20] sm:$0xff]
    %v1015 = vld [vmem:[#allocation8 + $0x28] sm:$0xff]
    %v1016 = vld [vmem:[#allocation8 + $0x30] sm:$0xff]
    %v1017 = vld [vmem:[#allocation8 + $0x38] sm:$0xff]
    %v1018 = vld [vmem:[#allocation8 + $0x40] sm:$0xff]
    %v1019 = vld [vmem:[#allocation8 + $0x48] sm:$0xff]
    %v1020 = vld [vmem:[#allocation8 + $0x50] sm:$0xff]
    %v1021 = vld [vmem:[#allocation8 + $0x58] sm:$0xff]
    %v1022 = vld [vmem:[#allocation8 + $0x60] sm:$0xff]
    %v1023 = vld [vmem:[#allocation8 + $0x68] sm:$0xff]
    %v1024 = vld [vmem:[#allocation8 + $0x70] sm:$0xff]
    %v1025 = vld [vmem:[#allocation8 + $0x78] sm:$0xff]
    %v1026 = vld [vmem:[#allocation8 + $0x80] sm:$0xff]
    %v1027 = vld [vmem:[#allocation8 + $0x88] sm:$0xff]
    %v1028 = vld [vmem:[#allocation8 + $0x90] sm:$0xff]
    %v1029 = vld [vmem:[#allocation8 + $0x98] sm:$0xff]
    %v1030 = vld [vmem:[#allocation8 + $0xa0] sm:$0xff]
    %v1031 = vld [vmem:[#allocation8 + $0xa8] sm:$0xff]
    %v1032 = vld [vmem:[#allocation8 + $0xb0] sm:$0xff]
    %v1033 = vld [vmem:[#allocation8 + $0xb8] sm:$0xff]
    %v1034 = vld [vmem:[#allocation8 + $0xc0] sm:$0xff]
    %v1035 = vld [vmem:[#allocation8 + $0xc8] sm:$0xff]
    %v1036 = vld [vmem:[#allocation8 + $0xd0] sm:$0xff]
    %v1037 = vld [vmem:[#allocation8 + $0xd8] sm:$0xff]
    %v1038 = vld [vmem:[#allocation8 + $0xe0] sm:$0xff]
    %v1039 = vld [vmem:[#allocation8 + $0xe8] sm:$0xff]
    %v1040 = vld [vmem:[#allocation8 + $0xf0] sm:$0xff]
    %v1041 = vld [vmem:[#allocation8 + $0xf8] sm:$0xff]
    %v1074 = vunpack.c.l.b16 %v1010
    %v1075 = vunpack.c.h.b16 %v1010
    %v1076 = vunpack.c.l.b16 %v1011
    %v1077 = vunpack.c.h.b16 %v1011
    %v1078 = vunpack.c.l.b16 %v1012
    %v1079 = vunpack.c.h.b16 %v1012
    %v1080 = vunpack.c.l.b16 %v1013
    %v1081 = vunpack.c.h.b16 %v1013
    %v1082 = vunpack.c.l.b16 %v1014
    %v1083 = vunpack.c.h.b16 %v1014
    %v1084 = vunpack.c.l.b16 %v1015
    %v1085 = vunpack.c.h.b16 %v1015
    %v1086 = vunpack.c.l.b16 %v1016
    %v1087 = vunpack.c.h.b16 %v1016
    %v1088 = vunpack.c.l.b16 %v1017
    %v1089 = vunpack.c.h.b16 %v1017
    %v1090 = vunpack.c.l.b16 %v1018
    %v1091 = vunpack.c.h.b16 %v1018
    %v1092 = vunpack.c.l.b16 %v1019
    %v1093 = vunpack.c.h.b16 %v1019
    %v1094 = vunpack.c.l.b16 %v1020
    %v1095 = vunpack.c.h.b16 %v1020
    %v1096 = vunpack.c.l.b16 %v1021
    %v1097 = vunpack.c.h.b16 %v1021
    %v1098 = vunpack.c.l.b16 %v1022
    %v1099 = vunpack.c.h.b16 %v1022
    %v1100 = vunpack.c.l.b16 %v1023
    %v1101 = vunpack.c.h.b16 %v1023
    %v1102 = vunpack.c.l.b16 %v1024
    %v1103 = vunpack.c.h.b16 %v1024
    %v1104 = vunpack.c.l.b16 %v1025
    %v1105 = vunpack.c.h.b16 %v1025
    %v1106 = vunpack.c.l.b16 %v1026
    %v1107 = vunpack.c.h.b16 %v1026
    %v1108 = vunpack.c.l.b16 %v1027
    %v1109 = vunpack.c.h.b16 %v1027
    %v1110 = vunpack.c.l.b16 %v1028
    %v1111 = vunpack.c.h.b16 %v1028
    %v1112 = vunpack.c.l.b16 %v1029
    %v1113 = vunpack.c.h.b16 %v1029
    %v1114 = vunpack.c.l.b16 %v1030
    %v1115 = vunpack.c.h.b16 %v1030
    %v1116 = vunpack.c.l.b16 %v1031
    %v1117 = vunpack.c.h.b16 %v1031
    %v1118 = vunpack.c.l.b16 %v1032
    %v1119 = vunpack.c.h.b16 %v1032
    %v1120 = vunpack.c.l.b16 %v1033
    %v1121 = vunpack.c.h.b16 %v1033
    %v1122 = vunpack.c.l.b16 %v1034
    %v1123 = vunpack.c.h.b16 %v1034
    %v1124 = vunpack.c.l.b16 %v1035
    %v1125 = vunpack.c.h.b16 %v1035
    %v1126 = vunpack.c.l.b16 %v1036
    %v1127 = vunpack.c.h.b16 %v1036
    %v1128 = vunpack.c.l.b16 %v1037
    %v1129 = vunpack.c.h.b16 %v1037
    %v1130 = vunpack.c.l.b16 %v1038
    %v1131 = vunpack.c.h.b16 %v1038
    %v1132 = vunpack.c.l.b16 %v1039
    %v1133 = vunpack.c.h.b16 %v1039
    %v1134 = vunpack.c.l.b16 %v1040
    %v1135 = vunpack.c.h.b16 %v1040
    %v1136 = vunpack.c.l.b16 %v1041
    %v1137 = vunpack.c.h.b16 %v1041
    %v1138 = vpack.c.b16 %v1078, %v1074
    %v1139 = vpack.c.b16 %v1079, %v1075
    %v1140 = vpack.c.b16 %v1080, %v1076
    %v1141 = vpack.c.b16 %v1081, %v1077
    %v1142 = vpack.c.b16 %v1086, %v1082
    %v1143 = vpack.c.b16 %v1087, %v1083
    %v1144 = vpack.c.b16 %v1088, %v1084
    %v1145 = vpack.c.b16 %v1089, %v1085
    %v1146 = vpack.c.b16 %v1094, %v1090
    %v1147 = vpack.c.b16 %v1095, %v1091
    %v1148 = vpack.c.b16 %v1096, %v1092
    %v1149 = vpack.c.b16 %v1097, %v1093
    %v1150 = vpack.c.b16 %v1102, %v1098
    %v1151 = vpack.c.b16 %v1103, %v1099
    %v1152 = vpack.c.b16 %v1104, %v1100
    %v1153 = vpack.c.b16 %v1105, %v1101
    %v1154 = vpack.c.b16 %v1110, %v1106
    %v1155 = vpack.c.b16 %v1111, %v1107
    %v1156 = vpack.c.b16 %v1112, %v1108
    %v1157 = vpack.c.b16 %v1113, %v1109
    %v1158 = vpack.c.b16 %v1118, %v1114
    %v1159 = vpack.c.b16 %v1119, %v1115
    %v1160 = vpack.c.b16 %v1120, %v1116
    %v1161 = vpack.c.b16 %v1121, %v1117
    %v1162 = vpack.c.b16 %v1126, %v1122
    %v1163 = vpack.c.b16 %v1127, %v1123
    %v1164 = vpack.c.b16 %v1128, %v1124
    %v1165 = vpack.c.b16 %v1129, %v1125
    %v1166 = vpack.c.b16 %v1134, %v1130
    %v1167 = vpack.c.b16 %v1135, %v1131
    %v1168 = vpack.c.b16 %v1136, %v1132
    %v1169 = vpack.c.b16 %v1137, %v1133
    %1202 = vmatprep.subr.bf16.mxu0 %v1139
    %1203 = vmatpush1.bf16.msra.mxu0 %v1138
    %1204 = vmatprep.subr.bf16.mxu0 %v1143
    %1205 = vmatpush1.bf16.msra.mxu0 %v1142
    %1206 = vmatprep.subr.bf16.mxu0 %v1147
    %1207 = vmatpush1.bf16.msra.mxu0 %v1146
    %1208 = vmatprep.subr.bf16.mxu0 %v1151
    %1209 = vmatpush1.bf16.msra.mxu0 %v1150
    %1210 = vmatprep.subr.bf16.mxu0 %v1155
    %1211 = vmatpush1.bf16.msra.mxu0 %v1154
    %1212 = vmatprep.subr.bf16.mxu0 %v1159
    %1213 = vmatpush1.bf16.msra.mxu0 %v1158
    %1214 = vmatprep.subr.bf16.mxu0 %v1163
    %1215 = vmatpush1.bf16.msra.mxu0 %v1162
    %1216 = vmatprep.subr.bf16.mxu0 %v1167
    %1217 = vmatpush1.bf16.msra.mxu0 %v1166
    %1218 = vmatprep.subr.bf16.mxu0 0
    %1219 = vmatpush1.bf16.msra.mxu0 0
    %1220 = vmatprep.subr.bf16.mxu0 0
    %1221 = vmatpush1.bf16.msra.mxu0 0
    %1222 = vmatprep.subr.bf16.mxu0 0
    %1223 = vmatpush1.bf16.msra.mxu0 0
    %1224 = vmatprep.subr.bf16.mxu0 0
    %1225 = vmatpush1.bf16.msra.mxu0 0
    %1226 = vmatprep.subr.bf16.mxu0 0
    %1227 = vmatpush1.bf16.msra.mxu0 0
    %1228 = vmatprep.subr.bf16.mxu0 0
    %1229 = vmatpush1.bf16.msra.mxu0 0
    %1230 = vmatprep.subr.bf16.mxu0 0
    %1231 = vmatpush1.bf16.msra.mxu0 0
    %1232 = vmatprep.subr.bf16.mxu0 0
    %1233 = vmatpush1.bf16.msra.mxu0 0
    %1234 = vmatprep.mubr.bf16.mxu0 0
    %1235 = vmatmul.mubr.bf16.gmra.mrb[0].mxu0 %v1009
    %v1236 = vpop.f32.mrb[0].mxu0
    %v1237 = vadd.f32 0.0, %v1236
    %v1238 = vpop.f32.mrb[0].mxu0
    %v1239 = vadd.f32 0.0, %v1238
    %v1240 = vpop.f32.mrb[0].mxu0
    %v1241 = vpop.f32.mrb[0].mxu0
    %1242 = vdwg.mxu0
    %1243 = vmatprep.subr.bf16.mxu0 %v1141
    %1244 = vmatpush1.bf16.msra.mxu0 %v1140
    %1245 = vmatprep.subr.bf16.mxu0 %v1145
    %1246 = vmatpush1.bf16.msra.mxu0 %v1144
    %1247 = vmatprep.subr.bf16.mxu0 %v1149
    %1248 = vmatpush1.bf16.msra.mxu0 %v1148
    %1249 = vmatprep.subr.bf16.mxu0 %v1153
    %1250 = vmatpush1.bf16.msra.mxu0 %v1152
    %1251 = vmatprep.subr.bf16.mxu0 %v1157
    %1252 = vmatpush1.bf16.msra.mxu0 %v1156
    %1253 = vmatprep.subr.bf16.mxu0 %v1161
    %1254 = vmatpush1.bf16.msra.mxu0 %v1160
    %1255 = vmatprep.subr.bf16.mxu0 %v1165
    %1256 = vmatpush1.bf16.msra.mxu0 %v1164
    %1257 = vmatprep.subr.bf16.mxu0 %v1169
    %1258 = vmatpush1.bf16.msra.mxu0 %v1168
    %1259 = vmatprep.subr.bf16.mxu0 0
    %1260 = vmatpush1.bf16.msra.mxu0 0
    %1261 = vmatprep.subr.bf16.mxu0 0
    %1262 = vmatpush1.bf16.msra.mxu0 0
    %1263 = vmatprep.subr.bf16.mxu0 0
    %1264 = vmatpush1.bf16.msra.mxu0 0
    %1265 = vmatprep.subr.bf16.mxu0 0
    %1266 = vmatpush1.bf16.msra.mxu0 0
    %1267 = vmatprep.subr.bf16.mxu0 0
    %1268 = vmatpush1.bf16.msra.mxu0 0
    %1269 = vmatprep.subr.bf16.mxu0 0
    %1270 = vmatpush1.bf16.msra.mxu0 0
    %1271 = vmatprep.subr.bf16.mxu0 0
    %1272 = vmatpush1.bf16.msra.mxu0 0
    %1273 = vmatprep.subr.bf16.mxu0 0
    %1274 = vmatpush1.bf16.msra.mxu0 0
    %1275 = vmatprep.mubr.bf16.mxu0 0
    %1276 = vmatmul.mubr.bf16.gmra.mrb[0].mxu0 %v1009
    %v1277 = vpop.f32.mrb[0].mxu0
    %v1278 = vadd.f32 0.0, %v1277
    %v1279 = vpop.f32.mrb[0].mxu0
    %v1280 = vadd.f32 0.0, %v1279
    %v1281 = vpop.f32.mrb[0].mxu0
    %v1282 = vpop.f32.mrb[0].mxu0
    %1283 = vdwg.mxu0
    %v1284 = vadd.f32 %v1005, %v1237
    %v1285 = vadd.f32 %v1006, %v1239
    %v1286 = vadd.f32 %v1007, %v1278
    %v1287 = vadd.f32 %v1008, %v1280
    %v1288 = vxor.u32 %v1284, 2147483648
    %v1289 = vxor.u32 %v1285, 2147483648
    %v1290 = vxor.u32 %v1286, 2147483648
    %v1291 = vmul.f32 %v1288, 1.442695
    %v1292 = vpow.pop %v1291
    %v1293 = vmul.f32 %v1289, 1.442695
    %v1294 = vpow.pop %v1293
    %v1295 = vmul.f32 %v1290, 1.442695
    %v1296 = vpow.pop %v1295
    %v1297 = vadd.f32 %v1292, 1.0
    %v1298 = vadd.f32 %v1294, 1.0
    %v1299 = vadd.f32 %v1296, 1.0
    %v1300 = vrcp.pop %v1297
    %v1301 = vmul.f32 1.0, %v1300
    %v1302 = vrcp.pop %v1298
    %v1303 = vmul.f32 1.0, %v1302
    %v1304 = vrcp.pop %v1299
    %v1305 = vmul.f32 1.0, %v1304
    %v1306 = vtanh.pop %v1287
    %v1307 = vmul.f32 %v1303, %v997
    %v1308 = vmul.f32 %v1301, %v1306
    %v1309 = vadd.f32 %v1307, %v1308
    %v1310 = vtanh.pop %v1309
    %v1311 = vmul.f32 %v1305, %v1310
    %s1312 = scalar_lea.vmem [#allocation4], 24
    %1313 = vst [vmem:[%s1312] sm:$0xff] %v1311
    %s1314 = scalar_lea.vmem [#allocation5], 64
    %v1315 = vld [vmem:[%s1314] sm:$0xff]
    %v1316 = vld [vmem:[%s1314 + $0x8] sm:$0xff]
    %v1317 = vunpack.c.l.bf16 %v1315
    %v1318 = vunpack.c.h.bf16 %v1315
    %v1319 = vunpack.c.l.bf16 %v1316
    %v1320 = vunpack.c.h.bf16 %v1316
    %v1321 = vpack.c.bf16 %v1311, %v1311
    %v1322 = vld [vmem:[#allocation8] sm:$0xff]
    %v1323 = vld [vmem:[#allocation8 + $0x8] sm:$0xff]
    %v1324 = vld [vmem:[#allocation8 + $0x10] sm:$0xff]
    %v1325 = vld [vmem:[#allocation8 + $0x18] sm:$0xff]
    %v1326 = vld [vmem:[#allocation8 + $0x20] sm:$0xff]
    %v1327 = vld [vmem:[#allocation8 + $0x28] sm:$0xff]
    %v1328 = vld [vmem:[#allocation8 + $0x30] sm:$0xff]
    %v1329 = vld [vmem:[#allocation8 + $0x38] sm:$0xff]
    %v1330 = vld [vmem:[#allocation8 + $0x40] sm:$0xff]
    %v1331 = vld [vmem:[#allocation8 + $0x48] sm:$0xff]
    %v1332 = vld [vmem:[#allocation8 + $0x50] sm:$0xff]
    %v1333 = vld [vmem:[#allocation8 + $0x58] sm:$0xff]
    %v1334 = vld [vmem:[#allocation8 + $0x60] sm:$0xff]
    %v1335 = vld [vmem:[#allocation8 + $0x68] sm:$0xff]
    %v1336 = vld [vmem:[#allocation8 + $0x70] sm:$0xff]
    %v1337 = vld [vmem:[#allocation8 + $0x78] sm:$0xff]
    %v1338 = vld [vmem:[#allocation8 + $0x80] sm:$0xff]
    %v1339 = vld [vmem:[#allocation8 + $0x88] sm:$0xff]
    %v1340 = vld [vmem:[#allocation8 + $0x90] sm:$0xff]
    %v1341 = vld [vmem:[#allocation8 + $0x98] sm:$0xff]
    %v1342 = vld [vmem:[#allocation8 + $0xa0] sm:$0xff]
    %v1343 = vld [vmem:[#allocation8 + $0xa8] sm:$0xff]
    %v1344 = vld [vmem:[#allocation8 + $0xb0] sm:$0xff]
    %v1345 = vld [vmem:[#allocation8 + $0xb8] sm:$0xff]
    %v1346 = vld [vmem:[#allocation8 + $0xc0] sm:$0xff]
    %v1347 = vld [vmem:[#allocation8 + $0xc8] sm:$0xff]
    %v1348 = vld [vmem:[#allocation8 + $0xd0] sm:$0xff]
    %v1349 = vld [vmem:[#allocation8 + $0xd8] sm:$0xff]
    %v1350 = vld [vmem:[#allocation8 + $0xe0] sm:$0xff]
    %v1351 = vld [vmem:[#allocation8 + $0xe8] sm:$0xff]
    %v1352 = vld [vmem:[#allocation8 + $0xf0] sm:$0xff]
    %v1353 = vld [vmem:[#allocation8 + $0xf8] sm:$0xff]
    %v1386 = vunpack.c.l.b16 %v1322
    %v1387 = vunpack.c.h.b16 %v1322
    %v1388 = vunpack.c.l.b16 %v1323
    %v1389 = vunpack.c.h.b16 %v1323
    %v1390 = vunpack.c.l.b16 %v1324
    %v1391 = vunpack.c.h.b16 %v1324
    %v1392 = vunpack.c.l.b16 %v1325
    %v1393 = vunpack.c.h.b16 %v1325
    %v1394 = vunpack.c.l.b16 %v1326
    %v1395 = vunpack.c.h.b16 %v1326
    %v1396 = vunpack.c.l.b16 %v1327
    %v1397 = vunpack.c.h.b16 %v1327
    %v1398 = vunpack.c.l.b16 %v1328
    %v1399 = vunpack.c.h.b16 %v1328
    %v1400 = vunpack.c.l.b16 %v1329
    %v1401 = vunpack.c.h.b16 %v1329
    %v1402 = vunpack.c.l.b16 %v1330
    %v1403 = vunpack.c.h.b16 %v1330
    %v1404 = vunpack.c.l.b16 %v1331
    %v1405 = vunpack.c.h.b16 %v1331
    %v1406 = vunpack.c.l.b16 %v1332
    %v1407 = vunpack.c.h.b16 %v1332
    %v1408 = vunpack.c.l.b16 %v1333
    %v1409 = vunpack.c.h.b16 %v1333
    %v1410 = vunpack.c.l.b16 %v1334
    %v1411 = vunpack.c.h.b16 %v1334
    %v1412 = vunpack.c.l.b16 %v1335
    %v1413 = vunpack.c.h.b16 %v1335
    %v1414 = vunpack.c.l.b16 %v1336
    %v1415 = vunpack.c.h.b16 %v1336
    %v1416 = vunpack.c.l.b16 %v1337
    %v1417 = vunpack.c.h.b16 %v1337
    %v1418 = vunpack.c.l.b16 %v1338
    %v1419 = vunpack.c.h.b16 %v1338
    %v1420 = vunpack.c.l.b16 %v1339
    %v1421 = vunpack.c.h.b16 %v1339
    %v1422 = vunpack.c.l.b16 %v1340
    %v1423 = vunpack.c.h.b16 %v1340
    %v1424 = vunpack.c.l.b16 %v1341
    %v1425 = vunpack.c.h.b16 %v1341
    %v1426 = vunpack.c.l.b16 %v1342
    %v1427 = vunpack.c.h.b16 %v1342
    %v1428 = vunpack.c.l.b16 %v1343
    %v1429 = vunpack.c.h.b16 %v1343
    %v1430 = vunpack.c.l.b16 %v1344
    %v1431 = vunpack.c.h.b16 %v1344
    %v1432 = vunpack.c.l.b16 %v1345
    %v1433 = vunpack.c.h.b16 %v1345
    %v1434 = vunpack.c.l.b16 %v1346
    %v1435 = vunpack.c.h.b16 %v1346
    %v1436 = vunpack.c.l.b16 %v1347
    %v1437 = vunpack.c.h.b16 %v1347
    %v1438 = vunpack.c.l.b16 %v1348
    %v1439 = vunpack.c.h.b16 %v1348
    %v1440 = vunpack.c.l.b16 %v1349
    %v1441 = vunpack.c.h.b16 %v1349
    %v1442 = vunpack.c.l.b16 %v1350
    %v1443 = vunpack.c.h.b16 %v1350
    %v1444 = vunpack.c.l.b16 %v1351
    %v1445 = vunpack.c.h.b16 %v1351
    %v1446 = vunpack.c.l.b16 %v1352
    %v1447 = vunpack.c.h.b16 %v1352
    %v1448 = vunpack.c.l.b16 %v1353
    %v1449 = vunpack.c.h.b16 %v1353
    %v1450 = vpack.c.b16 %v1390, %v1386
    %v1451 = vpack.c.b16 %v1391, %v1387
    %v1452 = vpack.c.b16 %v1392, %v1388
    %v1453 = vpack.c.b16 %v1393, %v1389
    %v1454 = vpack.c.b16 %v1398, %v1394
    %v1455 = vpack.c.b16 %v1399, %v1395
    %v1456 = vpack.c.b16 %v1400, %v1396
    %v1457 = vpack.c.b16 %v1401, %v1397
    %v1458 = vpack.c.b16 %v1406, %v1402
    %v1459 = vpack.c.b16 %v1407, %v1403
    %v1460 = vpack.c.b16 %v1408, %v1404
    %v1461 = vpack.c.b16 %v1409, %v1405
    %v1462 = vpack.c.b16 %v1414, %v1410
    %v1463 = vpack.c.b16 %v1415, %v1411
    %v1464 = vpack.c.b16 %v1416, %v1412
    %v1465 = vpack.c.b16 %v1417, %v1413
    %v1466 = vpack.c.b16 %v1422, %v1418
    %v1467 = vpack.c.b16 %v1423, %v1419
    %v1468 = vpack.c.b16 %v1424, %v1420
    %v1469 = vpack.c.b16 %v1425, %v1421
    %v1470 = vpack.c.b16 %v1430, %v1426
    %v1471 = vpack.c.b16 %v1431, %v1427
    %v1472 = vpack.c.b16 %v1432, %v1428
    %v1473 = vpack.c.b16 %v1433, %v1429
    %v1474 = vpack.c.b16 %v1438, %v1434
    %v1475 = vpack.c.b16 %v1439, %v1435
    %v1476 = vpack.c.b16 %v1440, %v1436
    %v1477 = vpack.c.b16 %v1441, %v1437
    %v1478 = vpack.c.b16 %v1446, %v1442
    %v1479 = vpack.c.b16 %v1447, %v1443
    %v1480 = vpack.c.b16 %v1448, %v1444
    %v1481 = vpack.c.b16 %v1449, %v1445
    %1514 = vmatprep.subr.bf16.mxu0 %v1451
    %1515 = vmatpush1.bf16.msra.mxu0 %v1450
    %1516 = vmatprep.subr.bf16.mxu0 %v1455
    %1517 = vmatpush1.bf16.msra.mxu0 %v1454
    %1518 = vmatprep.subr.bf16.mxu0 %v1459
    %1519 = vmatpush1.bf16.msra.mxu0 %v1458
    %1520 = vmatprep.subr.bf16.mxu0 %v1463
    %1521 = vmatpush1.bf16.msra.mxu0 %v1462
    %1522 = vmatprep.subr.bf16.mxu0 %v1467
    %1523 = vmatpush1.bf16.msra.mxu0 %v1466
    %1524 = vmatprep.subr.bf16.mxu0 %v1471
    %1525 = vmatpush1.bf16.msra.mxu0 %v1470
    %1526 = vmatprep.subr.bf16.mxu0 %v1475
    %1527 = vmatpush1.bf16.msra.mxu0 %v1474
    %1528 = vmatprep.subr.bf16.mxu0 %v1479
    %1529 = vmatpush1.bf16.msra.mxu0 %v1478
    %1530 = vmatprep.subr.bf16.mxu0 0
    %1531 = vmatpush1.bf16.msra.mxu0 0
    %1532 = vmatprep.subr.bf16.mxu0 0
    %1533 = vmatpush1.bf16.msra.mxu0 0
    %1534 = vmatprep.subr.bf16.mxu0 0
    %1535 = vmatpush1.bf16.msra.mxu0 0
    %1536 = vmatprep.subr.bf16.mxu0 0
    %1537 = vmatpush1.bf16.msra.mxu0 0
    %1538 = vmatprep.subr.bf16.mxu0 0
    %1539 = vmatpush1.bf16.msra.mxu0 0
    %1540 = vmatprep.subr.bf16.mxu0 0
    %1541 = vmatpush1.bf16.msra.mxu0 0
    %1542 = vmatprep.subr.bf16.mxu0 0
    %1543 = vmatpush1.bf16.msra.mxu0 0
    %1544 = vmatprep.subr.bf16.mxu0 0
    %1545 = vmatpush1.bf16.msra.mxu0 0
    %1546 = vmatprep.mubr.bf16.mxu0 0
    %1547 = vmatmul.mubr.bf16.gmra.mrb[0].mxu0 %v1321
    %v1548 = vpop.f32.mrb[0].mxu0
    %v1549 = vadd.f32 0.0, %v1548
    %v1550 = vpop.f32.mrb[0].mxu0
    %v1551 = vadd.f32 0.0, %v1550
    %v1552 = vpop.f32.mrb[0].mxu0
    %v1553 = vpop.f32.mrb[0].mxu0
    %1554 = vdwg.mxu0
    %1555 = vmatprep.subr.bf16.mxu0 %v1453
    %1556 = vmatpush1.bf16.msra.mxu0 %v1452
    %1557 = vmatprep.subr.bf16.mxu0 %v1457
    %1558 = vmatpush1.bf16.msra.mxu0 %v1456
    %1559 = vmatprep.subr.bf16.mxu0 %v1461
    %1560 = vmatpush1.bf16.msra.mxu0 %v1460
    %1561 = vmatprep.subr.bf16.mxu0 %v1465
    %1562 = vmatpush1.bf16.msra.mxu0 %v1464
    %1563 = vmatprep.subr.bf16.mxu0 %v1469
    %1564 = vmatpush1.bf16.msra.mxu0 %v1468
    %1565 = vmatprep.subr.bf16.mxu0 %v1473
    %1566 = vmatpush1.bf16.msra.mxu0 %v1472
    %1567 = vmatprep.subr.bf16.mxu0 %v1477
    %1568 = vmatpush1.bf16.msra.mxu0 %v1476
    %1569 = vmatprep.subr.bf16.mxu0 %v1481
    %1570 = vmatpush1.bf16.msra.mxu0 %v1480
    %1571 = vmatprep.subr.bf16.mxu0 0
    %1572 = vmatpush1.bf16.msra.mxu0 0
    %1573 = vmatprep.subr.bf16.mxu0 0
    %1574 = vmatpush1.bf16.msra.mxu0 0
    %1575 = vmatprep.subr.bf16.mxu0 0
    %1576 = vmatpush1.bf16.msra.mxu0 0
    %1577 = vmatprep.subr.bf16.mxu0 0
    %1578 = vmatpush1.bf16.msra.mxu0 0
    %1579 = vmatprep.subr.bf16.mxu0 0
    %1580 = vmatpush1.bf16.msra.mxu0 0
    %1581 = vmatprep.subr.bf16.mxu0 0
    %1582 = vmatpush1.bf16.msra.mxu0 0
    %1583 = vmatprep.subr.bf16.mxu0 0
    %1584 = vmatpush1.bf16.msra.mxu0 0
    %1585 = vmatprep.subr.bf16.mxu0 0
    %1586 = vmatpush1.bf16.msra.mxu0 0
    %1587 = vmatprep.mubr.bf16.mxu0 0
    %1588 = vmatmul.mubr.bf16.gmra.mrb[0].mxu0 %v1321
    %v1589 = vpop.f32.mrb[0].mxu0
    %v1590 = vadd.f32 0.0, %v1589
    %v1591 = vpop.f32.mrb[0].mxu0
    %v1592 = vadd.f32 0.0, %v1591
    %v1593 = vpop.f32.mrb[0].mxu0
    %v1594 = vpop.f32.mrb[0].mxu0
    %1595 = vdwg.mxu0
    %v1596 = vadd.f32 %v1317, %v1549
    %v1597 = vadd.f32 %v1318, %v1551
    %v1598 = vadd.f32 %v1319, %v1590
    %v1599 = vadd.f32 %v1320, %v1592
    %v1600 = vxor.u32 %v1596, 2147483648
    %v1601 = vxor.u32 %v1597, 2147483648
    %v1602 = vxor.u32 %v1598, 2147483648
    %v1603 = vmul.f32 %v1600, 1.442695
    %v1604 = vpow.pop %v1603
    %v1605 = vmul.f32 %v1601, 1.442695
    %v1606 = vpow.pop %v1605
    %v1607 = vmul.f32 %v1602, 1.442695
    %v1608 = vpow.pop %v1607
    %v1609 = vadd.f32 %v1604, 1.0
    %v1610 = vadd.f32 %v1606, 1.0
    %v1611 = vadd.f32 %v1608, 1.0
    %v1612 = vrcp.pop %v1609
    %v1613 = vmul.f32 1.0, %v1612
    %v1614 = vrcp.pop %v1610
    %v1615 = vmul.f32 1.0, %v1614
    %v1616 = vrcp.pop %v1611
    %v1617 = vmul.f32 1.0, %v1616
    %v1618 = vtanh.pop %v1599
    %v1619 = vmul.f32 %v1615, %v1309
    %v1620 = vmul.f32 %v1613, %v1618
    %v1621 = vadd.f32 %v1619, %v1620
    %v1622 = vtanh.pop %v1621
    %v1623 = vmul.f32 %v1617, %v1622
    %s1624 = scalar_lea.vmem [#allocation4], 32
    %1625 = vst [vmem:[%s1624] sm:$0xff] %v1623
    %s1626 = scalar_lea.vmem [#allocation5], 80
    %v1627 = vld [vmem:[%s1626] sm:$0xff]
    %v1628 = vld [vmem:[%s1626 + $0x8] sm:$0xff]
    %v1629 = vunpack.c.l.bf16 %v1627
    %v1630 = vunpack.c.h.bf16 %v1627
    %v1631 = vunpack.c.l.bf16 %v1628
    %v1632 = vunpack.c.h.bf16 %v1628
    %v1633 = vpack.c.bf16 %v1623, %v1623
    %v1634 = vld [vmem:[#allocation8] sm:$0xff]
    %v1635 = vld [vmem:[#allocation8 + $0x8] sm:$0xff]
    %v1636 = vld [vmem:[#allocation8 + $0x10] sm:$0xff]
    %v1637 = vld [vmem:[#allocation8 + $0x18] sm:$0xff]
    %v1638 = vld [vmem:[#allocation8 + $0x20] sm:$0xff]
    %v1639 = vld [vmem:[#allocation8 + $0x28] sm:$0xff]
    %v1640 = vld [vmem:[#allocation8 + $0x30] sm:$0xff]
    %v1641 = vld [vmem:[#allocation8 + $0x38] sm:$0xff]
    %v1642 = vld [vmem:[#allocation8 + $0x40] sm:$0xff]
    %v1643 = vld [vmem:[#allocation8 + $0x48] sm:$0xff]
    %v1644 = vld [vmem:[#allocation8 + $0x50] sm:$0xff]
    %v1645 = vld [vmem:[#allocation8 + $0x58] sm:$0xff]
    %v1646 = vld [vmem:[#allocation8 + $0x60] sm:$0xff]
    %v1647 = vld [vmem:[#allocation8 + $0x68] sm:$0xff]
    %v1648 = vld [vmem:[#allocation8 + $0x70] sm:$0xff]
    %v1649 = vld [vmem:[#allocation8 + $0x78] sm:$0xff]
    %v1650 = vld [vmem:[#allocation8 + $0x80] sm:$0xff]
    %v1651 = vld [vmem:[#allocation8 + $0x88] sm:$0xff]
    %v1652 = vld [vmem:[#allocation8 + $0x90] sm:$0xff]
    %v1653 = vld [vmem:[#allocation8 + $0x98] sm:$0xff]
    %v1654 = vld [vmem:[#allocation8 + $0xa0] sm:$0xff]
    %v1655 = vld [vmem:[#allocation8 + $0xa8] sm:$0xff]
    %v1656 = vld [vmem:[#allocation8 + $0xb0] sm:$0xff]
    %v1657 = vld [vmem:[#allocation8 + $0xb8] sm:$0xff]
    %v1658 = vld [vmem:[#allocation8 + $0xc0] sm:$0xff]
    %v1659 = vld [vmem:[#allocation8 + $0xc8] sm:$0xff]
    %v1660 = vld [vmem:[#allocation8 + $0xd0] sm:$0xff]
    %v1661 = vld [vmem:[#allocation8 + $0xd8] sm:$0xff]
    %v1662 = vld [vmem:[#allocation8 + $0xe0] sm:$0xff]
    %v1663 = vld [vmem:[#allocation8 + $0xe8] sm:$0xff]
    %v1664 = vld [vmem:[#allocation8 + $0xf0] sm:$0xff]
    %v1665 = vld [vmem:[#allocation8 + $0xf8] sm:$0xff]
    %v1698 = vunpack.c.l.b16 %v1634
    %v1699 = vunpack.c.h.b16 %v1634
    %v1700 = vunpack.c.l.b16 %v1635
    %v1701 = vunpack.c.h.b16 %v1635
    %v1702 = vunpack.c.l.b16 %v1636
    %v1703 = vunpack.c.h.b16 %v1636
    %v1704 = vunpack.c.l.b16 %v1637
    %v1705 = vunpack.c.h.b16 %v1637
    %v1706 = vunpack.c.l.b16 %v1638
    %v1707 = vunpack.c.h.b16 %v1638
    %v1708 = vunpack.c.l.b16 %v1639
    %v1709 = vunpack.c.h.b16 %v1639
    %v1710 = vunpack.c.l.b16 %v1640
    %v1711 = vunpack.c.h.b16 %v1640
    %v1712 = vunpack.c.l.b16 %v1641
    %v1713 = vunpack.c.h.b16 %v1641
    %v1714 = vunpack.c.l.b16 %v1642
    %v1715 = vunpack.c.h.b16 %v1642
    %v1716 = vunpack.c.l.b16 %v1643
    %v1717 = vunpack.c.h.b16 %v1643
    %v1718 = vunpack.c.l.b16 %v1644
    %v1719 = vunpack.c.h.b16 %v1644
    %v1720 = vunpack.c.l.b16 %v1645
    %v1721 = vunpack.c.h.b16 %v1645
    %v1722 = vunpack.c.l.b16 %v1646
    %v1723 = vunpack.c.h.b16 %v1646
    %v1724 = vunpack.c.l.b16 %v1647
    %v1725 = vunpack.c.h.b16 %v1647
    %v1726 = vunpack.c.l.b16 %v1648
    %v1727 = vunpack.c.h.b16 %v1648
    %v1728 = vunpack.c.l.b16 %v1649
    %v1729 = vunpack.c.h.b16 %v1649
    %v1730 = vunpack.c.l.b16 %v1650
    %v1731 = vunpack.c.h.b16 %v1650
    %v1732 = vunpack.c.l.b16 %v1651
    %v1733 = vunpack.c.h.b16 %v1651
    %v1734 = vunpack.c.l.b16 %v1652
    %v1735 = vunpack.c.h.b16 %v1652
    %v1736 = vunpack.c.l.b16 %v1653
    %v1737 = vunpack.c.h.b16 %v1653
    %v1738 = vunpack.c.l.b16 %v1654
    %v1739 = vunpack.c.h.b16 %v1654
    %v1740 = vunpack.c.l.b16 %v1655
    %v1741 = vunpack.c.h.b16 %v1655
    %v1742 = vunpack.c.l.b16 %v1656
    %v1743 = vunpack.c.h.b16 %v1656
    %v1744 = vunpack.c.l.b16 %v1657
    %v1745 = vunpack.c.h.b16 %v1657
    %v1746 = vunpack.c.l.b16 %v1658
    %v1747 = vunpack.c.h.b16 %v1658
    %v1748 = vunpack.c.l.b16 %v1659
    %v1749 = vunpack.c.h.b16 %v1659
    %v1750 = vunpack.c.l.b16 %v1660
    %v1751 = vunpack.c.h.b16 %v1660
    %v1752 = vunpack.c.l.b16 %v1661
    %v1753 = vunpack.c.h.b16 %v1661
    %v1754 = vunpack.c.l.b16 %v1662
    %v1755 = vunpack.c.h.b16 %v1662
    %v1756 = vunpack.c.l.b16 %v1663
    %v1757 = vunpack.c.h.b16 %v1663
    %v1758 = vunpack.c.l.b16 %v1664
    %v1759 = vunpack.c.h.b16 %v1664
    %v1760 = vunpack.c.l.b16 %v1665
    %v1761 = vunpack.c.h.b16 %v1665
    %v1762 = vpack.c.b16 %v1702, %v1698
    %v1763 = vpack.c.b16 %v1703, %v1699
    %v1764 = vpack.c.b16 %v1704, %v1700
    %v1765 = vpack.c.b16 %v1705, %v1701
    %v1766 = vpack.c.b16 %v1710, %v1706
    %v1767 = vpack.c.b16 %v1711, %v1707
    %v1768 = vpack.c.b16 %v1712, %v1708
    %v1769 = vpack.c.b16 %v1713, %v1709
    %v1770 = vpack.c.b16 %v1718, %v1714
    %v1771 = vpack.c.b16 %v1719, %v1715
    %v1772 = vpack.c.b16 %v1720, %v1716
    %v1773 = vpack.c.b16 %v1721, %v1717
    %v1774 = vpack.c.b16 %v1726, %v1722
    %v1775 = vpack.c.b16 %v1727, %v1723
    %v1776 = vpack.c.b16 %v1728, %v1724
    %v1777 = vpack.c.b16 %v1729, %v1725
    %v1778 = vpack.c.b16 %v1734, %v1730
    %v1779 = vpack.c.b16 %v1735, %v1731
    %v1780 = vpack.c.b16 %v1736, %v1732
    %v1781 = vpack.c.b16 %v1737, %v1733
    %v1782 = vpack.c.b16 %v1742, %v1738
    %v1783 = vpack.c.b16 %v1743, %v1739
    %v1784 = vpack.c.b16 %v1744, %v1740
    %v1785 = vpack.c.b16 %v1745, %v1741
    %v1786 = vpack.c.b16 %v1750, %v1746
    %v1787 = vpack.c.b16 %v1751, %v1747
    %v1788 = vpack.c.b16 %v1752, %v1748
    %v1789 = vpack.c.b16 %v1753, %v1749
    %v1790 = vpack.c.b16 %v1758, %v1754
    %v1791 = vpack.c.b16 %v1759, %v1755
    %v1792 = vpack.c.b16 %v1760, %v1756
    %v1793 = vpack.c.b16 %v1761, %v1757
    %1826 = vmatprep.subr.bf16.mxu0 %v1763
    %1827 = vmatpush1.bf16.msra.mxu0 %v1762
    %1828 = vmatprep.subr.bf16.mxu0 %v1767
    %1829 = vmatpush1.bf16.msra.mxu0 %v1766
    %1830 = vmatprep.subr.bf16.mxu0 %v1771
    %1831 = vmatpush1.bf16.msra.mxu0 %v1770
    %1832 = vmatprep.subr.bf16.mxu0 %v1775
    %1833 = vmatpush1.bf16.msra.mxu0 %v1774
    %1834 = vmatprep.subr.bf16.mxu0 %v1779
    %1835 = vmatpush1.bf16.msra.mxu0 %v1778
    %1836 = vmatprep.subr.bf16.mxu0 %v1783
    %1837 = vmatpush1.bf16.msra.mxu0 %v1782
    %1838 = vmatprep.subr.bf16.mxu0 %v1787
    %1839 = vmatpush1.bf16.msra.mxu0 %v1786
    %1840 = vmatprep.subr.bf16.mxu0 %v1791
    %1841 = vmatpush1.bf16.msra.mxu0 %v1790
    %1842 = vmatprep.subr.bf16.mxu0 0
    %1843 = vmatpush1.bf16.msra.mxu0 0
    %1844 = vmatprep.subr.bf16.mxu0 0
    %1845 = vmatpush1.bf16.msra.mxu0 0
    %1846 = vmatprep.subr.bf16.mxu0 0
    %1847 = vmatpush1.bf16.msra.mxu0 0
    %1848 = vmatprep.subr.bf16.mxu0 0
    %1849 = vmatpush1.bf16.msra.mxu0 0
    %1850 = vmatprep.subr.bf16.mxu0 0
    %1851 = vmatpush1.bf16.msra.mxu0 0
    %1852 = vmatprep.subr.bf16.mxu0 0
    %1853 = vmatpush1.bf16.msra.mxu0 0
    %1854 = vmatprep.subr.bf16.mxu0 0
    %1855 = vmatpush1.bf16.msra.mxu0 0
    %1856 = vmatprep.subr.bf16.mxu0 0
    %1857 = vmatpush1.bf16.msra.mxu0 0
    %1858 = vmatprep.mubr.bf16.mxu0 0
    %1859 = vmatmul.mubr.bf16.gmra.mrb[0].mxu0 %v1633
    %v1860 = vpop.f32.mrb[0].mxu0
    %v1861 = vadd.f32 0.0, %v1860
    %v1862 = vpop.f32.mrb[0].mxu0
    %v1863 = vadd.f32 0.0, %v1862
    %v1864 = vpop.f32.mrb[0].mxu0
    %v1865 = vpop.f32.mrb[0].mxu0
    %1866 = vdwg.mxu0
    %1867 = vmatprep.subr.bf16.mxu0 %v1765
    %1868 = vmatpush1.bf16.msra.mxu0 %v1764
    %1869 = vmatprep.subr.bf16.mxu0 %v1769
    %1870 = vmatpush1.bf16.msra.mxu0 %v1768
    %1871 = vmatprep.subr.bf16.mxu0 %v1773
    %1872 = vmatpush1.bf16.msra.mxu0 %v1772
    %1873 = vmatprep.subr.bf16.mxu0 %v1777
    %1874 = vmatpush1.bf16.msra.mxu0 %v1776
    %1875 = vmatprep.subr.bf16.mxu0 %v1781
    %1876 = vmatpush1.bf16.msra.mxu0 %v1780
    %1877 = vmatprep.subr.bf16.mxu0 %v1785
    %1878 = vmatpush1.bf16.msra.mxu0 %v1784
    %1879 = vmatprep.subr.bf16.mxu0 %v1789
    %1880 = vmatpush1.bf16.msra.mxu0 %v1788
    %1881 = vmatprep.subr.bf16.mxu0 %v1793
    %1882 = vmatpush1.bf16.msra.mxu0 %v1792
    %1883 = vmatprep.subr.bf16.mxu0 0
    %1884 = vmatpush1.bf16.msra.mxu0 0
    %1885 = vmatprep.subr.bf16.mxu0 0
    %1886 = vmatpush1.bf16.msra.mxu0 0
    %1887 = vmatprep.subr.bf16.mxu0 0
    %1888 = vmatpush1.bf16.msra.mxu0 0
    %1889 = vmatprep.subr.bf16.mxu0 0
    %1890 = vmatpush1.bf16.msra.mxu0 0
    %1891 = vmatprep.subr.bf16.mxu0 0
    %1892 = vmatpush1.bf16.msra.mxu0 0
    %1893 = vmatprep.subr.bf16.mxu0 0
    %1894 = vmatpush1.bf16.msra.mxu0 0
    %1895 = vmatprep.subr.bf16.mxu0 0
    %1896 = vmatpush1.bf16.msra.mxu0 0
    %1897 = vmatprep.subr.bf16.mxu0 0
    %1898 = vmatpush1.bf16.msra.mxu0 0
    %1899 = vmatprep.mubr.bf16.mxu0 0
    %1900 = vmatmul.mubr.bf16.gmra.mrb[0].mxu0 %v1633
    %v1901 = vpop.f32.mrb[0].mxu0
    %v1902 = vadd.f32 0.0, %v1901
    %v1903 = vpop.f32.mrb[0].mxu0
    %v1904 = vadd.f32 0.0, %v1903
    %v1905 = vpop.f32.mrb[0].mxu0
    %v1906 = vpop.f32.mrb[0].mxu0
    %1907 = vdwg.mxu0
    %v1908 = vadd.f32 %v1629, %v1861
    %v1909 = vadd.f32 %v1630, %v1863
    %v1910 = vadd.f32 %v1631, %v1902
    %v1911 = vadd.f32 %v1632, %v1904
    %v1912 = vxor.u32 %v1908, 2147483648
    %v1913 = vxor.u32 %v1909, 2147483648
    %v1914 = vxor.u32 %v1910, 2147483648
    %v1915 = vmul.f32 %v1912, 1.442695
    %v1916 = vpow.pop %v1915
    %v1917 = vmul.f32 %v1913, 1.442695
    %v1918 = vpow.pop %v1917
    %v1919 = vmul.f32 %v1914, 1.442695
    %v1920 = vpow.pop %v1919
    %v1921 = vadd.f32 %v1916, 1.0
    %v1922 = vadd.f32 %v1918, 1.0
    %v1923 = vadd.f32 %v1920, 1.0
    %v1924 = vrcp.pop %v1921
    %v1925 = vmul.f32 1.0, %v1924
    %v1926 = vrcp.pop %v1922
    %v1927 = vmul.f32 1.0, %v1926
    %v1928 = vrcp.pop %v1923
    %v1929 = vmul.f32 1.0, %v1928
    %v1930 = vtanh.pop %v1911
    %v1931 = vmul.f32 %v1927, %v1621
    %v1932 = vmul.f32 %v1925, %v1930
    %v1933 = vadd.f32 %v1931, %v1932
    %v1934 = vtanh.pop %v1933
    %v1935 = vmul.f32 %v1929, %v1934
    %s1936 = scalar_lea.vmem [#allocation4], 40
    %1937 = vst [vmem:[%s1936] sm:$0xff] %v1935
    %s1938 = scalar_lea.vmem [#allocation5], 96
    %v1939 = vld [vmem:[%s1938] sm:$0xff]
    %v1940 = vld [vmem:[%s1938 + $0x8] sm:$0xff]
    %v1941 = vunpack.c.l.bf16 %v1939
    %v1942 = vunpack.c.h.bf16 %v1939
    %v1943 = vunpack.c.l.bf16 %v1940
    %v1944 = vunpack.c.h.bf16 %v1940
    %v1945 = vpack.c.bf16 %v1935, %v1935
    %v1946 = vld [vmem:[#allocation8] sm:$0xff]
    %v1947 = vld [vmem:[#allocation8 + $0x8] sm:$0xff]
    %v1948 = vld [vmem:[#allocation8 + $0x10] sm:$0xff]
    %v1949 = vld [vmem:[#allocation8 + $0x18] sm:$0xff]
    %v1950 = vld [vmem:[#allocation8 + $0x20] sm:$0xff]
    %v1951 = vld [vmem:[#allocation8 + $0x28] sm:$0xff]
    %v1952 = vld [vmem:[#allocation8 + $0x30] sm:$0xff]
    %v1953 = vld [vmem:[#allocation8 + $0x38] sm:$0xff]
    %v1954 = vld [vmem:[#allocation8 + $0x40] sm:$0xff]
    %v1955 = vld [vmem:[#allocation8 + $0x48] sm:$0xff]
    %v1956 = vld [vmem:[#allocation8 + $0x50] sm:$0xff]
    %v1957 = vld [vmem:[#allocation8 + $0x58] sm:$0xff]
    %v1958 = vld [vmem:[#allocation8 + $0x60] sm:$0xff]
    %v1959 = vld [vmem:[#allocation8 + $0x68] sm:$0xff]
    %v1960 = vld [vmem:[#allocation8 + $0x70] sm:$0xff]
    %v1961 = vld [vmem:[#allocation8 + $0x78] sm:$0xff]
    %v1962 = vld [vmem:[#allocation8 + $0x80] sm:$0xff]
    %v1963 = vld [vmem:[#allocation8 + $0x88] sm:$0xff]
    %v1964 = vld [vmem:[#allocation8 + $0x90] sm:$0xff]
    %v1965 = vld [vmem:[#allocation8 + $0x98] sm:$0xff]
    %v1966 = vld [vmem:[#allocation8 + $0xa0] sm:$0xff]
    %v1967 = vld [vmem:[#allocation8 + $0xa8] sm:$0xff]
    %v1968 = vld [vmem:[#allocation8 + $0xb0] sm:$0xff]
    %v1969 = vld [vmem:[#allocation8 + $0xb8] sm:$0xff]
    %v1970 = vld [vmem:[#allocation8 + $0xc0] sm:$0xff]
    %v1971 = vld [vmem:[#allocation8 + $0xc8] sm:$0xff]
    %v1972 = vld [vmem:[#allocation8 + $0xd0] sm:$0xff]
    %v1973 = vld [vmem:[#allocation8 + $0xd8] sm:$0xff]
    %v1974 = vld [vmem:[#allocation8 + $0xe0] sm:$0xff]
    %v1975 = vld [vmem:[#allocation8 + $0xe8] sm:$0xff]
    %v1976 = vld [vmem:[#allocation8 + $0xf0] sm:$0xff]
    %v1977 = vld [vmem:[#allocation8 + $0xf8] sm:$0xff]
    %v2010 = vunpack.c.l.b16 %v1946
    %v2011 = vunpack.c.h.b16 %v1946
    %v2012 = vunpack.c.l.b16 %v1947
    %v2013 = vunpack.c.h.b16 %v1947
    %v2014 = vunpack.c.l.b16 %v1948
    %v2015 = vunpack.c.h.b16 %v1948
    %v2016 = vunpack.c.l.b16 %v1949
    %v2017 = vunpack.c.h.b16 %v1949
    %v2018 = vunpack.c.l.b16 %v1950
    %v2019 = vunpack.c.h.b16 %v1950
    %v2020 = vunpack.c.l.b16 %v1951
    %v2021 = vunpack.c.h.b16 %v1951
    %v2022 = vunpack.c.l.b16 %v1952
    %v2023 = vunpack.c.h.b16 %v1952
    %v2024 = vunpack.c.l.b16 %v1953
    %v2025 = vunpack.c.h.b16 %v1953
    %v2026 = vunpack.c.l.b16 %v1954
    %v2027 = vunpack.c.h.b16 %v1954
    %v2028 = vunpack.c.l.b16 %v1955
    %v2029 = vunpack.c.h.b16 %v1955
    %v2030 = vunpack.c.l.b16 %v1956
    %v2031 = vunpack.c.h.b16 %v1956
    %v2032 = vunpack.c.l.b16 %v1957
    %v2033 = vunpack.c.h.b16 %v1957
    %v2034 = vunpack.c.l.b16 %v1958
    %v2035 = vunpack.c.h.b16 %v1958
    %v2036 = vunpack.c.l.b16 %v1959
    %v2037 = vunpack.c.h.b16 %v1959
    %v2038 = vunpack.c.l.b16 %v1960
    %v2039 = vunpack.c.h.b16 %v1960
    %v2040 = vunpack.c.l.b16 %v1961
    %v2041 = vunpack.c.h.b16 %v1961
    %v2042 = vunpack.c.l.b16 %v1962
    %v2043 = vunpack.c.h.b16 %v1962
    %v2044 = vunpack.c.l.b16 %v1963
    %v2045 = vunpack.c.h.b16 %v1963
    %v2046 = vunpack.c.l.b16 %v1964
    %v2047 = vunpack.c.h.b16 %v1964
    %v2048 = vunpack.c.l.b16 %v1965
    %v2049 = vunpack.c.h.b16 %v1965
    %v2050 = vunpack.c.l.b16 %v1966
    %v2051 = vunpack.c.h.b16 %v1966
    %v2052 = vunpack.c.l.b16 %v1967
    %v2053 = vunpack.c.h.b16 %v1967
    %v2054 = vunpack.c.l.b16 %v1968
    %v2055 = vunpack.c.h.b16 %v1968
    %v2056 = vunpack.c.l.b16 %v1969
    %v2057 = vunpack.c.h.b16 %v1969
    %v2058 = vunpack.c.l.b16 %v1970
    %v2059 = vunpack.c.h.b16 %v1970
    %v2060 = vunpack.c.l.b16 %v1971
    %v2061 = vunpack.c.h.b16 %v1971
    %v2062 = vunpack.c.l.b16 %v1972
    %v2063 = vunpack.c.h.b16 %v1972
    %v2064 = vunpack.c.l.b16 %v1973
    %v2065 = vunpack.c.h.b16 %v1973
    %v2066 = vunpack.c.l.b16 %v1974
    %v2067 = vunpack.c.h.b16 %v1974
    %v2068 = vunpack.c.l.b16 %v1975
    %v2069 = vunpack.c.h.b16 %v1975
    %v2070 = vunpack.c.l.b16 %v1976
    %v2071 = vunpack.c.h.b16 %v1976
    %v2072 = vunpack.c.l.b16 %v1977
    %v2073 = vunpack.c.h.b16 %v1977
    %v2074 = vpack.c.b16 %v2014, %v2010
    %v2075 = vpack.c.b16 %v2015, %v2011
    %v2076 = vpack.c.b16 %v2016, %v2012
    %v2077 = vpack.c.b16 %v2017, %v2013
    %v2078 = vpack.c.b16 %v2022, %v2018
    %v2079 = vpack.c.b16 %v2023, %v2019
    %v2080 = vpack.c.b16 %v2024, %v2020
    %v2081 = vpack.c.b16 %v2025, %v2021
    %v2082 = vpack.c.b16 %v2030, %v2026
    %v2083 = vpack.c.b16 %v2031, %v2027
    %v2084 = vpack.c.b16 %v2032, %v2028
    %v2085 = vpack.c.b16 %v2033, %v2029
    %v2086 = vpack.c.b16 %v2038, %v2034
    %v2087 = vpack.c.b16 %v2039, %v2035
    %v2088 = vpack.c.b16 %v2040, %v2036
    %v2089 = vpack.c.b16 %v2041, %v2037
    %v2090 = vpack.c.b16 %v2046, %v2042
    %v2091 = vpack.c.b16 %v2047, %v2043
    %v2092 = vpack.c.b16 %v2048, %v2044
    %v2093 = vpack.c.b16 %v2049, %v2045
    %v2094 = vpack.c.b16 %v2054, %v2050
    %v2095 = vpack.c.b16 %v2055, %v2051
    %v2096 = vpack.c.b16 %v2056, %v2052
    %v2097 = vpack.c.b16 %v2057, %v2053
    %v2098 = vpack.c.b16 %v2062, %v2058
    %v2099 = vpack.c.b16 %v2063, %v2059
    %v2100 = vpack.c.b16 %v2064, %v2060
    %v2101 = vpack.c.b16 %v2065, %v2061
    %v2102 = vpack.c.b16 %v2070, %v2066
    %v2103 = vpack.c.b16 %v2071, %v2067
    %v2104 = vpack.c.b16 %v2072, %v2068
    %v2105 = vpack.c.b16 %v2073, %v2069
    %2138 = vmatprep.subr.bf16.mxu0 %v2075
    %2139 = vmatpush1.bf16.msra.mxu0 %v2074
    %2140 = vmatprep.subr.bf16.mxu0 %v2079
    %2141 = vmatpush1.bf16.msra.mxu0 %v2078
    %2142 = vmatprep.subr.bf16.mxu0 %v2083
    %2143 = vmatpush1.bf16.msra.mxu0 %v2082
    %2144 = vmatprep.subr.bf16.mxu0 %v2087
    %2145 = vmatpush1.bf16.msra.mxu0 %v2086
    %2146 = vmatprep.subr.bf16.mxu0 %v2091
    %2147 = vmatpush1.bf16.msra.mxu0 %v2090
    %2148 = vmatprep.subr.bf16.mxu0 %v2095
    %2149 = vmatpush1.bf16.msra.mxu0 %v2094
    %2150 = vmatprep.subr.bf16.mxu0 %v2099
    %2151 = vmatpush1.bf16.msra.mxu0 %v2098
    %2152 = vmatprep.subr.bf16.mxu0 %v2103
    %2153 = vmatpush1.bf16.msra.mxu0 %v2102
    %2154 = vmatprep.subr.bf16.mxu0 0
    %2155 = vmatpush1.bf16.msra.mxu0 0
    %2156 = vmatprep.subr.bf16.mxu0 0
    %2157 = vmatpush1.bf16.msra.mxu0 0
    %2158 = vmatprep.subr.bf16.mxu0 0
    %2159 = vmatpush1.bf16.msra.mxu0 0
    %2160 = vmatprep.subr.bf16.mxu0 0
    %2161 = vmatpush1.bf16.msra.mxu0 0
    %2162 = vmatprep.subr.bf16.mxu0 0
    %2163 = vmatpush1.bf16.msra.mxu0 0
    %2164 = vmatprep.subr.bf16.mxu0 0
    %2165 = vmatpush1.bf16.msra.mxu0 0
    %2166 = vmatprep.subr.bf16.mxu0 0
    %2167 = vmatpush1.bf16.msra.mxu0 0
    %2168 = vmatprep.subr.bf16.mxu0 0
    %2169 = vmatpush1.bf16.msra.mxu0 0
    %2170 = vmatprep.mubr.bf16.mxu0 0
    %2171 = vmatmul.mubr.bf16.gmra.mrb[0].mxu0 %v1945
    %v2172 = vpop.f32.mrb[0].mxu0
    %v2173 = vadd.f32 0.0, %v2172
    %v2174 = vpop.f32.mrb[0].mxu0
    %v2175 = vadd.f32 0.0, %v2174
    %v2176 = vpop.f32.mrb[0].mxu0
    %v2177 = vpop.f32.mrb[0].mxu0
    %2178 = vdwg.mxu0
    %2179 = vmatprep.subr.bf16.mxu0 %v2077
    %2180 = vmatpush1.bf16.msra.mxu0 %v2076
    %2181 = vmatprep.subr.bf16.mxu0 %v2081
    %2182 = vmatpush1.bf16.msra.mxu0 %v2080
    %2183 = vmatprep.subr.bf16.mxu0 %v2085
    %2184 = vmatpush1.bf16.msra.mxu0 %v2084
    %2185 = vmatprep.subr.bf16.mxu0 %v2089
    %2186 = vmatpush1.bf16.msra.mxu0 %v2088
    %2187 = vmatprep.subr.bf16.mxu0 %v2093
    %2188 = vmatpush1.bf16.msra.mxu0 %v2092
    %2189 = vmatprep.subr.bf16.mxu0 %v2097
    %2190 = vmatpush1.bf16.msra.mxu0 %v2096
    %2191 = vmatprep.subr.bf16.mxu0 %v2101
    %2192 = vmatpush1.bf16.msra.mxu0 %v2100
    %2193 = vmatprep.subr.bf16.mxu0 %v2105
    %2194 = vmatpush1.bf16.msra.mxu0 %v2104
    %2195 = vmatprep.subr.bf16.mxu0 0
    %2196 = vmatpush1.bf16.msra.mxu0 0
    %2197 = vmatprep.subr.bf16.mxu0 0
    %2198 = vmatpush1.bf16.msra.mxu0 0
    %2199 = vmatprep.subr.bf16.mxu0 0
    %2200 = vmatpush1.bf16.msra.mxu0 0
    %2201 = vmatprep.subr.bf16.mxu0 0
    %2202 = vmatpush1.bf16.msra.mxu0 0
    %2203 = vmatprep.subr.bf16.mxu0 0
    %2204 = vmatpush1.bf16.msra.mxu0 0
    %2205 = vmatprep.subr.bf16.mxu0 0
    %2206 = vmatpush1.bf16.msra.mxu0 0
    %2207 = vmatprep.subr.bf16.mxu0 0
    %2208 = vmatpush1.bf16.msra.mxu0 0
    %2209 = vmatprep.subr.bf16.mxu0 0
    %2210 = vmatpush1.bf16.msra.mxu0 0
    %2211 = vmatprep.mubr.bf16.mxu0 0
    %2212 = vmatmul.mubr.bf16.gmra.mrb[0].mxu0 %v1945
    %v2213 = vpop.f32.mrb[0].mxu0
    %v2214 = vadd.f32 0.0, %v2213
    %v2215 = vpop.f32.mrb[0].mxu0
    %v2216 = vadd.f32 0.0, %v2215
    %v2217 = vpop.f32.mrb[0].mxu0
    %v2218 = vpop.f32.mrb[0].mxu0
    %2219 = vdwg.mxu0
    %v2220 = vadd.f32 %v1941, %v2173
    %v2221 = vadd.f32 %v1942, %v2175
    %v2222 = vadd.f32 %v1943, %v2214
    %v2223 = vadd.f32 %v1944, %v2216
    %v2224 = vxor.u32 %v2220, 2147483648
    %v2225 = vxor.u32 %v2221, 2147483648
    %v2226 = vxor.u32 %v2222, 2147483648
    %v2227 = vmul.f32 %v2224, 1.442695
    %v2228 = vpow.pop %v2227
    %v2229 = vmul.f32 %v2225, 1.442695
    %v2230 = vpow.pop %v2229
    %v2231 = vmul.f32 %v2226, 1.442695
    %v2232 = vpow.pop %v2231
    %v2233 = vadd.f32 %v2228, 1.0
    %v2234 = vadd.f32 %v2230, 1.0
    %v2235 = vadd.f32 %v2232, 1.0
    %v2236 = vrcp.pop %v2233
    %v2237 = vmul.f32 1.0, %v2236
    %v2238 = vrcp.pop %v2234
    %v2239 = vmul.f32 1.0, %v2238
    %v2240 = vrcp.pop %v2235
    %v2241 = vmul.f32 1.0, %v2240
    %v2242 = vtanh.pop %v2223
    %v2243 = vmul.f32 %v2239, %v1933
    %v2244 = vmul.f32 %v2237, %v2242
    %v2245 = vadd.f32 %v2243, %v2244
    %v2246 = vtanh.pop %v2245
    %v2247 = vmul.f32 %v2241, %v2246
    %s2248 = scalar_lea.vmem [#allocation4], 48
    %2249 = vst [vmem:[%s2248] sm:$0xff] %v2247
    %s2250 = scalar_lea.vmem [#allocation5], 112
    %v2251 = vld [vmem:[%s2250] sm:$0xff]
    %v2252 = vld [vmem:[%s2250 + $0x8] sm:$0xff]
    %v2253 = vunpack.c.l.bf16 %v2251
    %v2254 = vunpack.c.h.bf16 %v2251
    %v2255 = vunpack.c.l.bf16 %v2252
    %v2256 = vunpack.c.h.bf16 %v2252
    %v2257 = vpack.c.bf16 %v2247, %v2247
    %v2258 = vld [vmem:[#allocation8] sm:$0xff]
    %v2259 = vld [vmem:[#allocation8 + $0x8] sm:$0xff]
    %v2260 = vld [vmem:[#allocation8 + $0x10] sm:$0xff]
    %v2261 = vld [vmem:[#allocation8 + $0x18] sm:$0xff]
    %v2262 = vld [vmem:[#allocation8 + $0x20] sm:$0xff]
    %v2263 = vld [vmem:[#allocation8 + $0x28] sm:$0xff]
    %v2264 = vld [vmem:[#allocation8 + $0x30] sm:$0xff]
    %v2265 = vld [vmem:[#allocation8 + $0x38] sm:$0xff]
    %v2266 = vld [vmem:[#allocation8 + $0x40] sm:$0xff]
    %v2267 = vld [vmem:[#allocation8 + $0x48] sm:$0xff]
    %v2268 = vld [vmem:[#allocation8 + $0x50] sm:$0xff]
    %v2269 = vld [vmem:[#allocation8 + $0x58] sm:$0xff]
    %v2270 = vld [vmem:[#allocation8 + $0x60] sm:$0xff]
    %v2271 = vld [vmem:[#allocation8 + $0x68] sm:$0xff]
    %v2272 = vld [vmem:[#allocation8 + $0x70] sm:$0xff]
    %v2273 = vld [vmem:[#allocation8 + $0x78] sm:$0xff]
    %v2274 = vld [vmem:[#allocation8 + $0x80] sm:$0xff]
    %v2275 = vld [vmem:[#allocation8 + $0x88] sm:$0xff]
    %v2276 = vld [vmem:[#allocation8 + $0x90] sm:$0xff]
    %v2277 = vld [vmem:[#allocation8 + $0x98] sm:$0xff]
    %v2278 = vld [vmem:[#allocation8 + $0xa0] sm:$0xff]
    %v2279 = vld [vmem:[#allocation8 + $0xa8] sm:$0xff]
    %v2280 = vld [vmem:[#allocation8 + $0xb0] sm:$0xff]
    %v2281 = vld [vmem:[#allocation8 + $0xb8] sm:$0xff]
    %v2282 = vld [vmem:[#allocation8 + $0xc0] sm:$0xff]
    %v2283 = vld [vmem:[#allocation8 + $0xc8] sm:$0xff]
    %v2284 = vld [vmem:[#allocation8 + $0xd0] sm:$0xff]
    %v2285 = vld [vmem:[#allocation8 + $0xd8] sm:$0xff]
    %v2286 = vld [vmem:[#allocation8 + $0xe0] sm:$0xff]
    %v2287 = vld [vmem:[#allocation8 + $0xe8] sm:$0xff]
    %v2288 = vld [vmem:[#allocation8 + $0xf0] sm:$0xff]
    %v2289 = vld [vmem:[#allocation8 + $0xf8] sm:$0xff]
    %v2322 = vunpack.c.l.b16 %v2258
    %v2323 = vunpack.c.h.b16 %v2258
    %v2324 = vunpack.c.l.b16 %v2259
    %v2325 = vunpack.c.h.b16 %v2259
    %v2326 = vunpack.c.l.b16 %v2260
    %v2327 = vunpack.c.h.b16 %v2260
    %v2328 = vunpack.c.l.b16 %v2261
    %v2329 = vunpack.c.h.b16 %v2261
    %v2330 = vunpack.c.l.b16 %v2262
    %v2331 = vunpack.c.h.b16 %v2262
    %v2332 = vunpack.c.l.b16 %v2263
    %v2333 = vunpack.c.h.b16 %v2263
    %v2334 = vunpack.c.l.b16 %v2264
    %v2335 = vunpack.c.h.b16 %v2264
    %v2336 = vunpack.c.l.b16 %v2265
    %v2337 = vunpack.c.h.b16 %v2265
    %v2338 = vunpack.c.l.b16 %v2266
    %v2339 = vunpack.c.h.b16 %v2266
    %v2340 = vunpack.c.l.b16 %v2267
    %v2341 = vunpack.c.h.b16 %v2267
    %v2342 = vunpack.c.l.b16 %v2268
    %v2343 = vunpack.c.h.b16 %v2268
    %v2344 = vunpack.c.l.b16 %v2269
    %v2345 = vunpack.c.h.b16 %v2269
    %v2346 = vunpack.c.l.b16 %v2270
    %v2347 = vunpack.c.h.b16 %v2270
    %v2348 = vunpack.c.l.b16 %v2271
    %v2349 = vunpack.c.h.b16 %v2271
    %v2350 = vunpack.c.l.b16 %v2272
    %v2351 = vunpack.c.h.b16 %v2272
    %v2352 = vunpack.c.l.b16 %v2273
    %v2353 = vunpack.c.h.b16 %v2273
    %v2354 = vunpack.c.l.b16 %v2274
    %v2355 = vunpack.c.h.b16 %v2274
    %v2356 = vunpack.c.l.b16 %v2275
    %v2357 = vunpack.c.h.b16 %v2275
    %v2358 = vunpack.c.l.b16 %v2276
    %v2359 = vunpack.c.h.b16 %v2276
    %v2360 = vunpack.c.l.b16 %v2277
    %v2361 = vunpack.c.h.b16 %v2277
    %v2362 = vunpack.c.l.b16 %v2278
    %v2363 = vunpack.c.h.b16 %v2278
    %v2364 = vunpack.c.l.b16 %v2279
    %v2365 = vunpack.c.h.b16 %v2279
    %v2366 = vunpack.c.l.b16 %v2280
    %v2367 = vunpack.c.h.b16 %v2280
    %v2368 = vunpack.c.l.b16 %v2281
    %v2369 = vunpack.c.h.b16 %v2281
    %v2370 = vunpack.c.l.b16 %v2282
    %v2371 = vunpack.c.h.b16 %v2282
    %v2372 = vunpack.c.l.b16 %v2283
    %v2373 = vunpack.c.h.b16 %v2283
    %v2374 = vunpack.c.l.b16 %v2284
    %v2375 = vunpack.c.h.b16 %v2284
    %v2376 = vunpack.c.l.b16 %v2285
    %v2377 = vunpack.c.h.b16 %v2285
    %v2378 = vunpack.c.l.b16 %v2286
    %v2379 = vunpack.c.h.b16 %v2286
    %v2380 = vunpack.c.l.b16 %v2287
    %v2381 = vunpack.c.h.b16 %v2287
    %v2382 = vunpack.c.l.b16 %v2288
    %v2383 = vunpack.c.h.b16 %v2288
    %v2384 = vunpack.c.l.b16 %v2289
    %v2385 = vunpack.c.h.b16 %v2289
    %v2386 = vpack.c.b16 %v2326, %v2322
    %v2387 = vpack.c.b16 %v2327, %v2323
    %v2388 = vpack.c.b16 %v2328, %v2324
    %v2389 = vpack.c.b16 %v2329, %v2325
    %v2390 = vpack.c.b16 %v2334, %v2330
    %v2391 = vpack.c.b16 %v2335, %v2331
    %v2392 = vpack.c.b16 %v2336, %v2332
    %v2393 = vpack.c.b16 %v2337, %v2333
    %v2394 = vpack.c.b16 %v2342, %v2338
    %v2395 = vpack.c.b16 %v2343, %v2339
    %v2396 = vpack.c.b16 %v2344, %v2340
    %v2397 = vpack.c.b16 %v2345, %v2341
    %v2398 = vpack.c.b16 %v2350, %v2346
    %v2399 = vpack.c.b16 %v2351, %v2347
    %v2400 = vpack.c.b16 %v2352, %v2348
    %v2401 = vpack.c.b16 %v2353, %v2349
    %v2402 = vpack.c.b16 %v2358, %v2354
    %v2403 = vpack.c.b16 %v2359, %v2355
    %v2404 = vpack.c.b16 %v2360, %v2356
    %v2405 = vpack.c.b16 %v2361, %v2357
    %v2406 = vpack.c.b16 %v2366, %v2362
    %v2407 = vpack.c.b16 %v2367, %v2363
    %v2408 = vpack.c.b16 %v2368, %v2364
    %v2409 = vpack.c.b16 %v2369, %v2365
    %v2410 = vpack.c.b16 %v2374, %v2370
    %v2411 = vpack.c.b16 %v2375, %v2371
    %v2412 = vpack.c.b16 %v2376, %v2372
    %v2413 = vpack.c.b16 %v2377, %v2373
    %v2414 = vpack.c.b16 %v2382, %v2378
    %v2415 = vpack.c.b16 %v2383, %v2379
    %v2416 = vpack.c.b16 %v2384, %v2380
    %v2417 = vpack.c.b16 %v2385, %v2381
    %2450 = vmatprep.subr.bf16.mxu0 %v2387
    %2451 = vmatpush1.bf16.msra.mxu0 %v2386
    %2452 = vmatprep.subr.bf16.mxu0 %v2391
    %2453 = vmatpush1.bf16.msra.mxu0 %v2390
    %2454 = vmatprep.subr.bf16.mxu0 %v2395
    %2455 = vmatpush1.bf16.msra.mxu0 %v2394
    %2456 = vmatprep.subr.bf16.mxu0 %v2399
    %2457 = vmatpush1.bf16.msra.mxu0 %v2398
    %2458 = vmatprep.subr.bf16.mxu0 %v2403
    %2459 = vmatpush1.bf16.msra.mxu0 %v2402
    %2460 = vmatprep.subr.bf16.mxu0 %v2407
    %2461 = vmatpush1.bf16.msra.mxu0 %v2406
    %2462 = vmatprep.subr.bf16.mxu0 %v2411
    %2463 = vmatpush1.bf16.msra.mxu0 %v2410
    %2464 = vmatprep.subr.bf16.mxu0 %v2415
    %2465 = vmatpush1.bf16.msra.mxu0 %v2414
    %2466 = vmatprep.subr.bf16.mxu0 0
    %2467 = vmatpush1.bf16.msra.mxu0 0
    %2468 = vmatprep.subr.bf16.mxu0 0
    %2469 = vmatpush1.bf16.msra.mxu0 0
    %2470 = vmatprep.subr.bf16.mxu0 0
    %2471 = vmatpush1.bf16.msra.mxu0 0
    %2472 = vmatprep.subr.bf16.mxu0 0
    %2473 = vmatpush1.bf16.msra.mxu0 0
    %2474 = vmatprep.subr.bf16.mxu0 0
    %2475 = vmatpush1.bf16.msra.mxu0 0
    %2476 = vmatprep.subr.bf16.mxu0 0
    %2477 = vmatpush1.bf16.msra.mxu0 0
    %2478 = vmatprep.subr.bf16.mxu0 0
    %2479 = vmatpush1.bf16.msra.mxu0 0
    %2480 = vmatprep.subr.bf16.mxu0 0
    %2481 = vmatpush1.bf16.msra.mxu0 0
    %2482 = vmatprep.mubr.bf16.mxu0 0
    %2483 = vmatmul.mubr.bf16.gmra.mrb[0].mxu0 %v2257
    %v2484 = vpop.f32.mrb[0].mxu0
    %v2485 = vadd.f32 0.0, %v2484
    %v2486 = vpop.f32.mrb[0].mxu0
    %v2487 = vadd.f32 0.0, %v2486
    %v2488 = vpop.f32.mrb[0].mxu0
    %v2489 = vpop.f32.mrb[0].mxu0
    %2490 = vdwg.mxu0
    %2491 = vmatprep.subr.bf16.mxu0 %v2389
    %2492 = vmatpush1.bf16.msra.mxu0 %v2388
    %2493 = vmatprep.subr.bf16.mxu0 %v2393
    %2494 = vmatpush1.bf16.msra.mxu0 %v2392
    %2495 = vmatprep.subr.bf16.mxu0 %v2397
    %2496 = vmatpush1.bf16.msra.mxu0 %v2396
    %2497 = vmatprep.subr.bf16.mxu0 %v2401
    %2498 = vmatpush1.bf16.msra.mxu0 %v2400
    %2499 = vmatprep.subr.bf16.mxu0 %v2405
    %2500 = vmatpush1.bf16.msra.mxu0 %v2404
    %2501 = vmatprep.subr.bf16.mxu0 %v2409
    %2502 = vmatpush1.bf16.msra.mxu0 %v2408
    %2503 = vmatprep.subr.bf16.mxu0 %v2413
    %2504 = vmatpush1.bf16.msra.mxu0 %v2412
    %2505 = vmatprep.subr.bf16.mxu0 %v2417
    %2506 = vmatpush1.bf16.msra.mxu0 %v2416
    %2507 = vmatprep.subr.bf16.mxu0 0
    %2508 = vmatpush1.bf16.msra.mxu0 0
    %2509 = vmatprep.subr.bf16.mxu0 0
    %2510 = vmatpush1.bf16.msra.mxu0 0
    %2511 = vmatprep.subr.bf16.mxu0 0
    %2512 = vmatpush1.bf16.msra.mxu0 0
    %2513 = vmatprep.subr.bf16.mxu0 0
    %2514 = vmatpush1.bf16.msra.mxu0 0
    %2515 = vmatprep.subr.bf16.mxu0 0
    %2516 = vmatpush1.bf16.msra.mxu0 0
    %2517 = vmatprep.subr.bf16.mxu0 0
    %2518 = vmatpush1.bf16.msra.mxu0 0
    %2519 = vmatprep.subr.bf16.mxu0 0
    %2520 = vmatpush1.bf16.msra.mxu0 0
    %2521 = vmatprep.subr.bf16.mxu0 0
    %2522 = vmatpush1.bf16.msra.mxu0 0
    %2523 = vmatprep.mubr.bf16.mxu0 0
    %2524 = vmatmul.mubr.bf16.gmra.mrb[0].mxu0 %v2257
    %v2525 = vpop.f32.mrb[0].mxu0
    %v2526 = vadd.f32 0.0, %v2525
    %v2527 = vpop.f32.mrb[0].mxu0
    %v2528 = vadd.f32 0.0, %v2527
    %v2529 = vpop.f32.mrb[0].mxu0
    %v2530 = vpop.f32.mrb[0].mxu0
    %2531 = vdwg.mxu0
    %v2532 = vadd.f32 %v2253, %v2485
    %v2533 = vadd.f32 %v2254, %v2487
    %v2534 = vadd.f32 %v2255, %v2526
    %v2535 = vadd.f32 %v2256, %v2528
    %v2536 = vxor.u32 %v2532, 2147483648
    %v2537 = vxor.u32 %v2533, 2147483648
    %v2538 = vxor.u32 %v2534, 2147483648
    %v2539 = vmul.f32 %v2536, 1.442695
    %v2540 = vpow.pop %v2539
    %v2541 = vmul.f32 %v2537, 1.442695
    %v2542 = vpow.pop %v2541
    %v2543 = vmul.f32 %v2538, 1.442695
    %v2544 = vpow.pop %v2543
    %v2545 = vadd.f32 %v2540, 1.0
    %v2546 = vadd.f32 %v2542, 1.0
    %v2547 = vadd.f32 %v2544, 1.0
    %v2548 = vrcp.pop %v2545
    %v2549 = vmul.f32 1.0, %v2548
    %v2550 = vrcp.pop %v2546
    %v2551 = vmul.f32 1.0, %v2550
    %v2552 = vrcp.pop %v2547
    %v2553 = vmul.f32 1.0, %v2552
    %v2554 = vtanh.pop %v2535
    %v2555 = vmul.f32 %v2551, %v2245
    %v2556 = vmul.f32 %v2549, %v2554
    %v2557 = vadd.f32 %v2555, %v2556
    %v2558 = vtanh.pop %v2557
    %v2559 = vmul.f32 %v2553, %v2558
    %s2560 = scalar_lea.vmem [#allocation4], 56
    %2561 = vst [vmem:[%s2560] sm:$0xff] %v2559
    %2562 = vst [vmem:[#allocation2] sm:$0xff] %v2559
    %2563 = vst [vmem:[#allocation3] sm:$0xff] %v2557
    %v2564 = vld [vmem:[#allocation4] sm:$0xff]
    %v2565 = vld [vmem:[#allocation4 + $0x8] sm:$0xff]
    %v2566 = vld [vmem:[#allocation4 + $0x10] sm:$0xff]
    %v2567 = vld [vmem:[#allocation4 + $0x18] sm:$0xff]
    %v2568 = vld [vmem:[#allocation4 + $0x20] sm:$0xff]
    %v2569 = vld [vmem:[#allocation4 + $0x28] sm:$0xff]
    %v2570 = vld [vmem:[#allocation4 + $0x30] sm:$0xff]
    %v2571 = vld [vmem:[#allocation4 + $0x38] sm:$0xff]
    %v2572 = vpack.c.bf16 %v2565, %v2564
    %v2573 = vpack.c.bf16 %v2567, %v2566
    %v2574 = vpack.c.bf16 %v2569, %v2568
    %v2575 = vpack.c.bf16 %v2571, %v2570
    %v2576 = vld [vmem:[#allocation10] sm:$0xf]
    %v2577 = vld [vmem:[#allocation10 + $0x4] sm:$0xf]
    %v2578 = vld [vmem:[#allocation10 + $0x8] sm:$0xf]
    %v2579 = vld [vmem:[#allocation10 + $0xc] sm:$0xf]
    %v2580 = vld [vmem:[#allocation10 + $0x10] sm:$0xf]
    %v2581 = vld [vmem:[#allocation10 + $0x14] sm:$0xf]
    %v2582 = vld [vmem:[#allocation10 + $0x18] sm:$0xf]
    %v2583 = vld [vmem:[#allocation10 + $0x1c] sm:$0xf]
    %v2584 = vld [vmem:[#allocation10 + $0x20] sm:$0xf]
    %v2585 = vld [vmem:[#allocation10 + $0x24] sm:$0xf]
    %v2586 = vld [vmem:[#allocation10 + $0x28] sm:$0xf]
    %v2587 = vld [vmem:[#allocation10 + $0x2c] sm:$0xf]
    %v2588 = vld [vmem:[#allocation10 + $0x30] sm:$0xf]
    %v2589 = vld [vmem:[#allocation10 + $0x34] sm:$0xf]
    %v2590 = vld [vmem:[#allocation10 + $0x38] sm:$0xf]
    %v2591 = vld [vmem:[#allocation10 + $0x3c] sm:$0xf]
    %v2592 = vld [vmem:[%s3] sm:$0x1]
    %v2594 = vlaneseq
    %v2595 = vshrl.u32 %v2594, 7
    %v2596 = vsub.s32 0, %v2595
    %v2597 = vrot.slane %v2592, %v2596
    %v2615 = vunpack.c.l.b16 %v2576
    %v2616 = vunpack.c.l.b16 %v2577
    %v2617 = vunpack.c.l.b16 %v2578
    %v2618 = vunpack.c.l.b16 %v2579
    %v2619 = vunpack.c.l.b16 %v2580
    %v2620 = vunpack.c.l.b16 %v2581
    %v2621 = vunpack.c.l.b16 %v2582
    %v2622 = vunpack.c.l.b16 %v2583
    %v2623 = vunpack.c.l.b16 %v2584
    %v2624 = vunpack.c.l.b16 %v2585
    %v2625 = vunpack.c.l.b16 %v2586
    %v2626 = vunpack.c.l.b16 %v2587
    %v2627 = vunpack.c.l.b16 %v2588
    %v2628 = vunpack.c.l.b16 %v2589
    %v2629 = vunpack.c.l.b16 %v2590
    %v2630 = vunpack.c.l.b16 %v2591
    %v2631 = vpack.c.b16 %v2616, %v2615
    %v2632 = vpack.c.b16 %v2618, %v2617
    %v2633 = vpack.c.b16 %v2620, %v2619
    %v2634 = vpack.c.b16 %v2622, %v2621
    %v2635 = vpack.c.b16 %v2624, %v2623
    %v2636 = vpack.c.b16 %v2626, %v2625
    %v2637 = vpack.c.b16 %v2628, %v2627
    %v2638 = vpack.c.b16 %v2630, %v2629
    %2647 = vmatprep.subr.bf16.mxu0 0
    %2648 = vmatpush1.bf16.msra.mxu0 %v2631
    %2649 = vmatprep.subr.bf16.mxu0 0
    %2650 = vmatpush1.bf16.msra.mxu0 %v2632
    %2651 = vmatprep.subr.bf16.mxu0 0
    %2652 = vmatpush1.bf16.msra.mxu0 %v2633
    %2653 = vmatprep.subr.bf16.mxu0 0
    %2654 = vmatpush1.bf16.msra.mxu0 %v2634
    %2655 = vmatprep.subr.bf16.mxu0 0
    %2656 = vmatpush1.bf16.msra.mxu0 %v2635
    %2657 = vmatprep.subr.bf16.mxu0 0
    %2658 = vmatpush1.bf16.msra.mxu0 %v2636
    %2659 = vmatprep.subr.bf16.mxu0 0
    %2660 = vmatpush1.bf16.msra.mxu0 %v2637
    %2661 = vmatprep.subr.bf16.mxu0 0
    %2662 = vmatpush1.bf16.msra.mxu0 %v2638
    %2663 = vmatprep.subr.bf16.mxu0 0
    %2664 = vmatpush1.bf16.msra.mxu0 0
    %2665 = vmatprep.subr.bf16.mxu0 0
    %2666 = vmatpush1.bf16.msra.mxu0 0
    %2667 = vmatprep.subr.bf16.mxu0 0
    %2668 = vmatpush1.bf16.msra.mxu0 0
    %2669 = vmatprep.subr.bf16.mxu0 0
    %2670 = vmatpush1.bf16.msra.mxu0 0
    %2671 = vmatprep.subr.bf16.mxu0 0
    %2672 = vmatpush1.bf16.msra.mxu0 0
    %2673 = vmatprep.subr.bf16.mxu0 0
    %2674 = vmatpush1.bf16.msra.mxu0 0
    %2675 = vmatprep.subr.bf16.mxu0 0
    %2676 = vmatpush1.bf16.msra.mxu0 0
    %2677 = vmatprep.subr.bf16.mxu0 0
    %2678 = vmatpush1.bf16.msra.mxu0 0
    %2679 = vmatprep.mubr.bf16.mxu0 0
    %2680 = vmatmul.mubr.bf16.gmra.mrb[0].mxu0 %v2572
    %v2681 = vpop.f32.mrb[0].mxu0
    %v2682 = vadd.f32 %v2597, %v2681
    %v2683 = vpop.f32.mrb[0].mxu0
    %v2684 = vpop.f32.mrb[0].mxu0
    %v2685 = vadd.f32 %v2597, %v2684
    %v2686 = vpop.f32.mrb[0].mxu0
    %2687 = vmatprep.mubr.bf16.mxu0 0
    %2688 = vmatmul.mubr.bf16.gmra.mrb[0].mxu0 %v2573
    %v2689 = vpop.f32.mrb[0].mxu0
    %v2690 = vadd.f32 %v2597, %v2689
    %v2691 = vpop.f32.mrb[0].mxu0
    %v2692 = vpop.f32.mrb[0].mxu0
    %v2693 = vadd.f32 %v2597, %v2692
    %v2694 = vpop.f32.mrb[0].mxu0
    %2695 = vmatprep.mubr.bf16.mxu0 0
    %2696 = vmatmul.mubr.bf16.gmra.mrb[0].mxu0 %v2574
    %v2697 = vpop.f32.mrb[0].mxu0
    %v2698 = vadd.f32 %v2597, %v2697
    %v2699 = vpop.f32.mrb[0].mxu0
    %v2700 = vpop.f32.mrb[0].mxu0
    %v2701 = vadd.f32 %v2597, %v2700
    %v2702 = vpop.f32.mrb[0].mxu0
    %2703 = vmatprep.mubr.bf16.mxu0 0
    %2704 = vmatmul.mubr.bf16.gmra.mrb[0].mxu0 %v2575
    %v2705 = vpop.f32.mrb[0].mxu0
    %v2706 = vadd.f32 %v2597, %v2705
    %v2707 = vpop.f32.mrb[0].mxu0
    %v2708 = vpop.f32.mrb[0].mxu0
    %v2709 = vadd.f32 %v2597, %v2708
    %v2710 = vpop.f32.mrb[0].mxu0
    %2711 = vdwg.mxu0
    %2712 = vst [vmem:[#allocation11] sm:$0xff] %v2682
    %2713 = vst [vmem:[#allocation11 + $0x8] sm:$0xff] %v2685
    %2714 = vst [vmem:[#allocation11 + $0x10] sm:$0xff] %v2690
    %2715 = vst [vmem:[#allocation11 + $0x18] sm:$0xff] %v2693
    %2716 = vst [vmem:[#allocation11 + $0x20] sm:$0xff] %v2698
    %2717 = vst [vmem:[#allocation11 + $0x28] sm:$0xff] %v2701
    %2718 = vst [vmem:[#allocation11 + $0x30] sm:$0xff] %v2706
    %2719 = vst [vmem:[#allocation11 + $0x38] sm:$0xff] %v2709
    // Predicated region
    $region34: #{tpu_custom_call.1} parent=1 // pred_check
      _
    $region35: #{tpu_custom_call.1} parent=1 // pred_check_branch
      %2721 = sbr.rel (0) target = $region37
    $region36: #{tpu_custom_call.1} parent=1 // pred_region
      %s2723 = ssub.s32 1024, 1024
      %2724 = vsyncadd [#allocation7], %s2723
      %s2725 = sshll.u32 [#allocation11], 4
      %s2726 = int_to_ptr.vmem [resolvable:$true] %s2725
      %2731 = dma.vmem_to_hbm [thread:$0]  %s2726, 1024, %s4, [#allocation7], 128, 128, 8
    $region37: #{tpu_custom_call.1} parent=1 // pred_fallthru
      _
    // Predicated region
    $region38: #{tpu_custom_call.1} parent=1 // pred_check
      _
    $region39: #{tpu_custom_call.1} parent=1 // pred_check_branch
      %2733 = sbr.rel (0) target = $region41
    $region40: #{tpu_custom_call.1} parent=1 // pred_region
      %2734 = dma.done [#allocation7], 1024
    $region41: #{tpu_custom_call.1} parent=1 // pred_fallthru
      _
    %2735 = vsyncpa [#allocation6], 1
    %2736 = vsyncpa [#allocation9], 1
    %2737 = vsyncpa [#allocation7], 1

</llo_original>
